<compile_context>
chip_gen: v6e
topology: v6e:2x2x1
jax: 0.10.0
libtpu: 0.0.40
codegen_flags: <defaults>
</compile_context>

<pallas_src>
import functools

import jax
import jax.numpy as jnp
from jax.experimental import pallas as pl
from jax.experimental.pallas import tpu as pltpu

KS = 7            # conv kernel size
PAD = KS // 2     # = 3
SLAB = 512        # lane-slab width for in-kernel tiling (multiple of 128)
ROW_GROUP = 8     # batch rows processed together in the conv/scale stage


def _round_up(v, m):
    return (v + m - 1) // m * m


def _spatial_attention_kernel(w_ref, x_ref, mask_ref, o_ref, avg_ref, max_ref,
                              *, C, W, HW, Nb, base, glen, ck, ck_s):
    # w_ref:    SMEM (2*7*7,) f32      -- flattened conv weight [in_ch, kh, kw]
    # x_ref:    VMEM (Nb, C, HW)       -- batch tile, flattened spatial
    # mask_ref: VMEM (7, HW) f32       -- per-kw column-validity masks
    # o_ref:    VMEM (Nb, C, HW)
    # avg_ref / max_ref: VMEM (Nb, glen) f32 -- row-padded flat avg/max maps
    f32 = jnp.float32
    inv_c = f32(1.0 / C)

    # Re-zero only the guard bands each step (interior is always overwritten;
    # cheap and stays correct under megacore grid partitioning).
    tail = glen - base - HW
    avg_ref[:, 0:base] = jnp.zeros((Nb, base), f32)
    avg_ref[:, base + HW:glen] = jnp.zeros((Nb, tail), f32)
    max_ref[:, 0:base] = jnp.zeros((Nb, base), f32)
    max_ref[:, base + HW:glen] = jnp.zeros((Nb, tail), f32)

    n_full = C // ck
    rem = C - n_full * ck

    # ---- Stage A: channel mean / max -> flat, row-padded f32 maps ----------
    # Channel-chunked loads keep sublanes full; one cross-sublane reduce per
    # slab at the end (XLU, otherwise idle here).
    for b in range(Nb):
        for j0 in range(0, HW, SLAB):
            L = min(SLAB, HW - j0)
            x0 = x_ref[b, 0:ck, j0:j0 + L].astype(f32)
            s_chunk = x0
            m_chunk = x0
            for ci in range(1, n_full):
                c0 = ci * ck
                xc = x_ref[b, c0:c0 + ck, j0:j0 + L].astype(f32)
                s_chunk = s_chunk + xc
                m_chunk = jnp.maximum(m_chunk, xc)
            s_row = jnp.sum(s_chunk, axis=0, keepdims=True)
            m_row = jnp.max(m_chunk, axis=0, keepdims=True)
            if rem:
                xr = x_ref[b, n_full * ck:C, j0:j0 + L].astype(f32)
                s_row = s_row + jnp.sum(xr, axis=0, keepdims=True)
                m_row = jnp.maximum(m_row, jnp.max(xr, axis=0, keepdims=True))
            # base and j0 are multiples of 128 -> lane-aligned stores.
            avg_ref[b:b + 1, base + j0:base + j0 + L] = s_row * inv_c
            max_ref[b:b + 1, base + j0:base + j0 + L] = m_row

    # ---- Hoist the 98 conv-weight scalar reads (SMEM) out of all loops ----
    wv = [[[w_ref[cin * KS * KS + kh * KS + kw] for kw in range(KS)]
           for kh in range(KS)] for cin in range(2)]

    # ---- Stage B+C: 7x7 conv + sigmoid + scale, batched across rows --------
    # Read index for output pixel j and tap (kh, kw) is
    #   base + j + (kh-3)*W + (kw-3);
    # row over/underflow lands in the zero guard bands, column wrap is zeroed
    # by the per-kw mask.
    maps = (avg_ref, max_ref)
    for b0 in range(0, Nb, ROW_GROUP):
        rg = min(ROW_GROUP, Nb - b0)
        for j0 in range(0, HW, SLAB):
            L = min(SLAB, HW - j0)
            acc = jnp.zeros((rg, L), f32)
            for kw in range(KS):
                part = jnp.zeros((rg, L), f32)
                for cin in range(2):
                    g = maps[cin]
                    for kh in range(KS):
                        start = base + j0 + (kh - PAD) * W + (kw - PAD)
                        part = part + wv[cin][kh][kw] * g[b0:b0 + rg,
                                                          start:start + L]
                acc = acc + part * mask_ref[kw:kw + 1, j0:j0 + L]
            attn = jax.nn.sigmoid(acc)                         # (rg, L) f32

            # Scale x by attn: multiply in f32, cast once at the store;
            # broadcast the attn row once per (b, slab) (no CSE of broadcasts).
            for bi in range(rg):
                b = b0 + bi
                attn_b = jnp.broadcast_to(attn[bi:bi + 1, :], (ck_s, L))
                for c0 in range(0, C, ck_s):
                    csz = min(ck_s, C - c0)
                    prod = (x_ref[b, c0:c0 + csz, j0:j0 + L].astype(f32)
                            * attn_b[0:csz, :])
                    o_ref[b, c0:c0 + csz, j0:j0 + L] = prod.astype(o_ref.dtype)


def _pick_batch_tile(n, bytes_per_batch, target_bytes=6 << 20):
    """Largest divisor of n whose io block stays within target_bytes."""
    best = 1
    for d in range(1, n + 1):
        if n % d == 0 and d * bytes_per_batch <= target_bytes:
            best = d
    return best


def spatial_attention(x, weight):
    """x: (N, C, H, W); weight: (1, 2, 7, 7) conv weight (no bias)."""
    N, C, H, W = x.shape
    HW = H * W
    itemsize = jnp.dtype(x.dtype).itemsize

    # Flat row-padded scratch geometry: guard bands above/below the HW
    # interior; interior start rounded up to a lane boundary.
    base = _round_up(PAD * W + PAD, 128)
    glen = _round_up(base + HW + PAD * W + PAD, 128)

    Nb = _pick_batch_tile(N, C * HW * itemsize)
    grid = (N // Nb,)

    # Sublane-dense channel chunk sizes for the native dtype.
    ck_pref = max(8, 32 // itemsize)      # 8 for f32, 16 for bf16, 32 for int8
    ck = min(ck_pref, C)
    ck_s = min(ck_pref, C)

    # Per-kw column-validity masks: a tap at column offset kw-3 must not read
    # across a row boundary of the flattened map.
    col = jnp.arange(HW, dtype=jnp.int32) % W
    masks = jnp.stack(
        [((col + (kw - PAD) >= 0) & (col + (kw - PAD) < W)).astype(jnp.float32)
         for kw in range(KS)], axis=0)                          # (7, HW)

    w_flat = weight[0].astype(jnp.float32).reshape(-1)          # (2*7*7,)
    x_flat = x.reshape(N, C, HW)

    kernel = functools.partial(_spatial_attention_kernel,
                               C=C, W=W, HW=HW, Nb=Nb, base=base, glen=glen,
                               ck=ck, ck_s=ck_s)

    # VMEM budget: in/out blocks double-buffered + mask + map scratch + slack.
    block_io = Nb * C * HW * itemsize
    need = 2 * block_io + 2 * block_io + 2 * (KS * HW * 4) + 2 * Nb * glen * 4
    vmem_limit = int(min(max(need + (4 << 20), 16 << 20), 48 << 20))
    # TODO(synk): for very large C*HW (per-batch block > ~12 MiB) a two-pass
    # split (reduce+conv+sigmoid pass, then channel-tiled scale pass) keeps
    # v7x's 64 MiB VMEM comfortable; single-pass is right at these sizes.

    out_flat = pl.pallas_call(
        kernel,
        out_shape=jax.ShapeDtypeStruct((N, C, HW), x.dtype),
        grid_spec=pltpu.PrefetchScalarGridSpec(
            num_scalar_prefetch=1,
            grid=grid,
            in_specs=[
                pl.BlockSpec((Nb, C, HW), lambda n, w: (n, 0, 0)),
                pl.BlockSpec((KS, HW), lambda n, w: (0, 0)),
            ],
            out_specs=pl.BlockSpec((Nb, C, HW), lambda n, w: (n, 0, 0)),
            scratch_shapes=[
                pltpu.VMEM((Nb, glen), jnp.float32),   # avg maps
                pltpu.VMEM((Nb, glen), jnp.float32),   # max maps
            ],
        ),
        compiler_params=pltpu.CompilerParams(
            dimension_semantics=("parallel",),
            vmem_limit_bytes=vmem_limit,
        ),
    )(w_flat, x_flat, masks)

    return out_flat.reshape(N, C, H, W)


def spatial_attention_ref(x, weight):
    avg = jnp.mean(x, axis=1, keepdims=True)
    mx = jnp.max(x, axis=1, keepdims=True)
    cat = jnp.concatenate([avg, mx], axis=1)
    conv = jax.lax.conv_general_dilated(
        cat, weight, window_strides=(1, 1),
        padding=[(PAD, PAD), (PAD, PAD)],
        dimension_numbers=("NCHW", "OIHW", "NCHW"),
    )
    return x * jax.nn.sigmoid(conv)


if __name__ == "__main__":
    N, C, H, W = 2, 4, 16, 16
    key = jax.random.PRNGKey(0)
    kx, kw_key = jax.random.split(key)

    x = jax.random.normal(kx, (N, C, H, W), dtype=jnp.float32)
    # Deterministic conv weight (shape from nn.Conv2d(2, 1, 7, bias=False)).
    fan_in = 2 * KS * KS
    weight = jax.random.normal(kw_key, (1, 2, KS, KS),
                               dtype=jnp.float32) / jnp.sqrt(fan_in)

    out = spatial_attention(x, weight)
    out = jax.block_until_ready(out)

    ref = spatial_attention_ref(x, weight)
    assert out.shape == (N, C, H, W)
    assert jnp.allclose(out, ref, atol=2e-4, rtol=2e-4), "mismatch vs reference"

    print("KERNEL_OK")
</pallas_src>

<mosaic_0001>
module attributes {stable_mosaic.version = 11 : i64} {
  func.func @_spatial_attention_kernel(%arg0: i32, %arg1: memref<98xf32, #tpu.memory_space<smem>>, %arg2: memref<2x4x256xf32, #tpu.memory_space<vmem>>, %arg3: memref<7x256xf32, #tpu.memory_space<vmem>>, %arg4: memref<2x4x256xf32, #tpu.memory_space<vmem>>, %arg5: memref<2x512xf32, #tpu.memory_space<vmem>>, %arg6: memref<2x512xf32, #tpu.memory_space<vmem>>) attributes {dimension_semantics = [#tpu.dimension_semantics<parallel>], iteration_bounds = array<i64: 1>, scalar_prefetch = 1 : i64, scratch_operands = 2 : i64, tpu.core_type = #tpu.core_type<tc>, window_params = [{transform_indices = @transform_0, window_bounds = array<i64: 2, 4, 256>}, {pipeline_mode = #tpu.pipeline_mode<synchronous>, transform_indices = @transform_1, window_bounds = array<i64: 7, 256>}, {transform_indices = @transform_2, window_bounds = array<i64: 2, 4, 256>}]} {
    %cst = arith.constant 0.000000e+00 : f32
    %0 = vector.broadcast %cst : f32 to vector<2x128xf32>
    %c0 = arith.constant 0 : index
    %c0_0 = arith.constant 0 : index
    %1 = vector.load %arg5[%c0, %c0_0] : memref<2x512xf32, #tpu.memory_space<vmem>>, vector<2x128xf32>
    tpu.vector_store %arg5[%c0, %c0_0], %0 {strides = array<i32>} : memref<2x512xf32, #tpu.memory_space<vmem>>, vector<2x128xf32>,
    %cst_1 = arith.constant 0.000000e+00 : f32
    %2 = vector.broadcast %cst_1 : f32 to vector<2x128xf32>
    %c0_2 = arith.constant 0 : index
    %c384 = arith.constant 384 : index
    %3 = vector.load %arg5[%c0_2, %c384] : memref<2x512xf32, #tpu.memory_space<vmem>>, vector<2x128xf32>
    tpu.vector_store %arg5[%c0_2, %c384], %2 {strides = array<i32>} : memref<2x512xf32, #tpu.memory_space<vmem>>, vector<2x128xf32>,
    %cst_3 = arith.constant 0.000000e+00 : f32
    %4 = vector.broadcast %cst_3 : f32 to vector<2x128xf32>
    %c0_4 = arith.constant 0 : index
    %c0_5 = arith.constant 0 : index
    %5 = vector.load %arg6[%c0_4, %c0_5] : memref<2x512xf32, #tpu.memory_space<vmem>>, vector<2x128xf32>
    tpu.vector_store %arg6[%c0_4, %c0_5], %4 {strides = array<i32>} : memref<2x512xf32, #tpu.memory_space<vmem>>, vector<2x128xf32>,
    %cst_6 = arith.constant 0.000000e+00 : f32
    %6 = vector.broadcast %cst_6 : f32 to vector<2x128xf32>
    %c0_7 = arith.constant 0 : index
    %c384_8 = arith.constant 384 : index
    %7 = vector.load %arg6[%c0_7, %c384_8] : memref<2x512xf32, #tpu.memory_space<vmem>>, vector<2x128xf32>
    tpu.vector_store %arg6[%c0_7, %c384_8], %6 {strides = array<i32>} : memref<2x512xf32, #tpu.memory_space<vmem>>, vector<2x128xf32>,
    %c0_9 = arith.constant 0 : index
    %c0_10 = arith.constant 0 : index
    %c0_11 = arith.constant 0 : index
    %8 = vector.load %arg2[%c0_9, %c0_10, %c0_11] : memref<2x4x256xf32, #tpu.memory_space<vmem>>, vector<1x4x256xf32>
    %9 = vector.shape_cast %8 : vector<1x4x256xf32> to vector<4x256xf32>
    %cst_12 = arith.constant dense<0.000000e+00> : vector<256xf32>
    %10 = vector.multi_reduction <add>, %9, %cst_12 [0] : vector<4x256xf32> to vector<256xf32>
    %11 = vector.shape_cast %10 : vector<256xf32> to vector<1x256xf32>
    %cst_13 = arith.constant dense<0xFF800000> : vector<256xf32>
    %12 = vector.multi_reduction <maximumf>, %9, %cst_13 [0] : vector<4x256xf32> to vector<256xf32>
    %13 = vector.shape_cast %12 : vector<256xf32> to vector<1x256xf32>
    %cst_14 = arith.constant 2.500000e-01 : f32
    %14 = vector.broadcast %cst_14 : f32 to vector<1x256xf32>
    %15 = arith.mulf %11, %14 : vector<1x256xf32>
    %c0_15 = arith.constant 0 : index
    %c128 = arith.constant 128 : index
    %16 = vector.load %arg5[%c0_15, %c128] : memref<2x512xf32, #tpu.memory_space<vmem>>, vector<1x256xf32>
    tpu.vector_store %arg5[%c0_15, %c128], %15 {strides = array<i32>} : memref<2x512xf32, #tpu.memory_space<vmem>>, vector<1x256xf32>,
    %c0_16 = arith.constant 0 : index
    %c128_17 = arith.constant 128 : index
    %17 = vector.load %arg6[%c0_16, %c128_17] : memref<2x512xf32, #tpu.memory_space<vmem>>, vector<1x256xf32>
    tpu.vector_store %arg6[%c0_16, %c128_17], %13 {strides = array<i32>} : memref<2x512xf32, #tpu.memory_space<vmem>>, vector<1x256xf32>,
    %c1 = arith.constant 1 : index
    %c0_18 = arith.constant 0 : index
    %c0_19 = arith.constant 0 : index
    %18 = vector.load %arg2[%c1, %c0_18, %c0_19] : memref<2x4x256xf32, #tpu.memory_space<vmem>>, vector<1x4x256xf32>
    %19 = vector.shape_cast %18 : vector<1x4x256xf32> to vector<4x256xf32>
    %cst_20 = arith.constant dense<0.000000e+00> : vector<256xf32>
    %20 = vector.multi_reduction <add>, %19, %cst_20 [0] : vector<4x256xf32> to vector<256xf32>
    %21 = vector.shape_cast %20 : vector<256xf32> to vector<1x256xf32>
    %cst_21 = arith.constant dense<0xFF800000> : vector<256xf32>
    %22 = vector.multi_reduction <maximumf>, %19, %cst_21 [0] : vector<4x256xf32> to vector<256xf32>
    %23 = vector.shape_cast %22 : vector<256xf32> to vector<1x256xf32>
    %cst_22 = arith.constant 2.500000e-01 : f32
    %24 = vector.broadcast %cst_22 : f32 to vector<1x256xf32>
    %25 = arith.mulf %21, %24 : vector<1x256xf32>
    %c1_23 = arith.constant 1 : index
    %c128_24 = arith.constant 128 : index
    %26 = vector.load %arg5[%c1_23, %c128_24] : memref<2x512xf32, #tpu.memory_space<vmem>>, vector<1x256xf32>
    tpu.vector_store %arg5[%c1_23, %c128_24], %25 {strides = array<i32>} : memref<2x512xf32, #tpu.memory_space<vmem>>, vector<1x256xf32>,
    %c1_25 = arith.constant 1 : index
    %c128_26 = arith.constant 128 : index
    %27 = vector.load %arg6[%c1_25, %c128_26] : memref<2x512xf32, #tpu.memory_space<vmem>>, vector<1x256xf32>
    tpu.vector_store %arg6[%c1_25, %c128_26], %23 {strides = array<i32>} : memref<2x512xf32, #tpu.memory_space<vmem>>, vector<1x256xf32>,
    %c0_27 = arith.constant 0 : index
    %28 = memref.load %arg1[%c0_27] : memref<98xf32, #tpu.memory_space<smem>>
    %c1_28 = arith.constant 1 : index
    %29 = memref.load %arg1[%c1_28] : memref<98xf32, #tpu.memory_space<smem>>
    %c2 = arith.constant 2 : index
    %30 = memref.load %arg1[%c2] : memref<98xf32, #tpu.memory_space<smem>>
    %c3 = arith.constant 3 : index
    %31 = memref.load %arg1[%c3] : memref<98xf32, #tpu.memory_space<smem>>
    %c4 = arith.constant 4 : index
    %32 = memref.load %arg1[%c4] : memref<98xf32, #tpu.memory_space<smem>>
    %c5 = arith.constant 5 : index
    %33 = memref.load %arg1[%c5] : memref<98xf32, #tpu.memory_space<smem>>
    %c6 = arith.constant 6 : index
    %34 = memref.load %arg1[%c6] : memref<98xf32, #tpu.memory_space<smem>>
    %c7 = arith.constant 7 : index
    %35 = memref.load %arg1[%c7] : memref<98xf32, #tpu.memory_space<smem>>
    %c8 = arith.constant 8 : index
    %36 = memref.load %arg1[%c8] : memref<98xf32, #tpu.memory_space<smem>>
    %c9 = arith.constant 9 : index
    %37 = memref.load %arg1[%c9] : memref<98xf32, #tpu.memory_space<smem>>
    %c10 = arith.constant 10 : index
    %38 = memref.load %arg1[%c10] : memref<98xf32, #tpu.memory_space<smem>>
    %c11 = arith.constant 11 : index
    %39 = memref.load %arg1[%c11] : memref<98xf32, #tpu.memory_space<smem>>
    %c12 = arith.constant 12 : index
    %40 = memref.load %arg1[%c12] : memref<98xf32, #tpu.memory_space<smem>>
    %c13 = arith.constant 13 : index
    %41 = memref.load %arg1[%c13] : memref<98xf32, #tpu.memory_space<smem>>
    %c14 = arith.constant 14 : index
    %42 = memref.load %arg1[%c14] : memref<98xf32, #tpu.memory_space<smem>>
    %c15 = arith.constant 15 : index
    %43 = memref.load %arg1[%c15] : memref<98xf32, #tpu.memory_space<smem>>
    %c16 = arith.constant 16 : index
    %44 = memref.load %arg1[%c16] : memref<98xf32, #tpu.memory_space<smem>>
    %c17 = arith.constant 17 : index
    %45 = memref.load %arg1[%c17] : memref<98xf32, #tpu.memory_space<smem>>
    %c18 = arith.constant 18 : index
    %46 = memref.load %arg1[%c18] : memref<98xf32, #tpu.memory_space<smem>>
    %c19 = arith.constant 19 : index
    %47 = memref.load %arg1[%c19] : memref<98xf32, #tpu.memory_space<smem>>
    %c20 = arith.constant 20 : index
    %48 = memref.load %arg1[%c20] : memref<98xf32, #tpu.memory_space<smem>>
    %c21 = arith.constant 21 : index
    %49 = memref.load %arg1[%c21] : memref<98xf32, #tpu.memory_space<smem>>
    %c22 = arith.constant 22 : index
    %50 = memref.load %arg1[%c22] : memref<98xf32, #tpu.memory_space<smem>>
    %c23 = arith.constant 23 : index
    %51 = memref.load %arg1[%c23] : memref<98xf32, #tpu.memory_space<smem>>
    %c24 = arith.constant 24 : index
    %52 = memref.load %arg1[%c24] : memref<98xf32, #tpu.memory_space<smem>>
    %c25 = arith.constant 25 : index
    %53 = memref.load %arg1[%c25] : memref<98xf32, #tpu.memory_space<smem>>
    %c26 = arith.constant 26 : index
    %54 = memref.load %arg1[%c26] : memref<98xf32, #tpu.memory_space<smem>>
    %c27 = arith.constant 27 : index
    %55 = memref.load %arg1[%c27] : memref<98xf32, #tpu.memory_space<smem>>
    %c28 = arith.constant 28 : index
    %56 = memref.load %arg1[%c28] : memref<98xf32, #tpu.memory_space<smem>>
    %c29 = arith.constant 29 : index
    %57 = memref.load %arg1[%c29] : memref<98xf32, #tpu.memory_space<smem>>
    %c30 = arith.constant 30 : index
    %58 = memref.load %arg1[%c30] : memref<98xf32, #tpu.memory_space<smem>>
    %c31 = arith.constant 31 : index
    %59 = memref.load %arg1[%c31] : memref<98xf32, #tpu.memory_space<smem>>
    %c32 = arith.constant 32 : index
    %60 = memref.load %arg1[%c32] : memref<98xf32, #tpu.memory_space<smem>>
    %c33 = arith.constant 33 : index
    %61 = memref.load %arg1[%c33] : memref<98xf32, #tpu.memory_space<smem>>
    %c34 = arith.constant 34 : index
    %62 = memref.load %arg1[%c34] : memref<98xf32, #tpu.memory_space<smem>>
    %c35 = arith.constant 35 : index
    %63 = memref.load %arg1[%c35] : memref<98xf32, #tpu.memory_space<smem>>
    %c36 = arith.constant 36 : index
    %64 = memref.load %arg1[%c36] : memref<98xf32, #tpu.memory_space<smem>>
    %c37 = arith.constant 37 : index
    %65 = memref.load %arg1[%c37] : memref<98xf32, #tpu.memory_space<smem>>
    %c38 = arith.constant 38 : index
    %66 = memref.load %arg1[%c38] : memref<98xf32, #tpu.memory_space<smem>>
    %c39 = arith.constant 39 : index
    %67 = memref.load %arg1[%c39] : memref<98xf32, #tpu.memory_space<smem>>
    %c40 = arith.constant 40 : index
    %68 = memref.load %arg1[%c40] : memref<98xf32, #tpu.memory_space<smem>>
    %c41 = arith.constant 41 : index
    %69 = memref.load %arg1[%c41] : memref<98xf32, #tpu.memory_space<smem>>
    %c42 = arith.constant 42 : index
    %70 = memref.load %arg1[%c42] : memref<98xf32, #tpu.memory_space<smem>>
    %c43 = arith.constant 43 : index
    %71 = memref.load %arg1[%c43] : memref<98xf32, #tpu.memory_space<smem>>
    %c44 = arith.constant 44 : index
    %72 = memref.load %arg1[%c44] : memref<98xf32, #tpu.memory_space<smem>>
    %c45 = arith.constant 45 : index
    %73 = memref.load %arg1[%c45] : memref<98xf32, #tpu.memory_space<smem>>
    %c46 = arith.constant 46 : index
    %74 = memref.load %arg1[%c46] : memref<98xf32, #tpu.memory_space<smem>>
    %c47 = arith.constant 47 : index
    %75 = memref.load %arg1[%c47] : memref<98xf32, #tpu.memory_space<smem>>
    %c48 = arith.constant 48 : index
    %76 = memref.load %arg1[%c48] : memref<98xf32, #tpu.memory_space<smem>>
    %c49 = arith.constant 49 : index
    %77 = memref.load %arg1[%c49] : memref<98xf32, #tpu.memory_space<smem>>
    %c50 = arith.constant 50 : index
    %78 = memref.load %arg1[%c50] : memref<98xf32, #tpu.memory_space<smem>>
    %c51 = arith.constant 51 : index
    %79 = memref.load %arg1[%c51] : memref<98xf32, #tpu.memory_space<smem>>
    %c52 = arith.constant 52 : index
    %80 = memref.load %arg1[%c52] : memref<98xf32, #tpu.memory_space<smem>>
    %c53 = arith.constant 53 : index
    %81 = memref.load %arg1[%c53] : memref<98xf32, #tpu.memory_space<smem>>
    %c54 = arith.constant 54 : index
    %82 = memref.load %arg1[%c54] : memref<98xf32, #tpu.memory_space<smem>>
    %c55 = arith.constant 55 : index
    %83 = memref.load %arg1[%c55] : memref<98xf32, #tpu.memory_space<smem>>
    %c56 = arith.constant 56 : index
    %84 = memref.load %arg1[%c56] : memref<98xf32, #tpu.memory_space<smem>>
    %c57 = arith.constant 57 : index
    %85 = memref.load %arg1[%c57] : memref<98xf32, #tpu.memory_space<smem>>
    %c58 = arith.constant 58 : index
    %86 = memref.load %arg1[%c58] : memref<98xf32, #tpu.memory_space<smem>>
    %c59 = arith.constant 59 : index
    %87 = memref.load %arg1[%c59] : memref<98xf32, #tpu.memory_space<smem>>
    %c60 = arith.constant 60 : index
    %88 = memref.load %arg1[%c60] : memref<98xf32, #tpu.memory_space<smem>>
    %c61 = arith.constant 61 : index
    %89 = memref.load %arg1[%c61] : memref<98xf32, #tpu.memory_space<smem>>
    %c62 = arith.constant 62 : index
    %90 = memref.load %arg1[%c62] : memref<98xf32, #tpu.memory_space<smem>>
    %c63 = arith.constant 63 : index
    %91 = memref.load %arg1[%c63] : memref<98xf32, #tpu.memory_space<smem>>
    %c64 = arith.constant 64 : index
    %92 = memref.load %arg1[%c64] : memref<98xf32, #tpu.memory_space<smem>>
    %c65 = arith.constant 65 : index
    %93 = memref.load %arg1[%c65] : memref<98xf32, #tpu.memory_space<smem>>
    %c66 = arith.constant 66 : index
    %94 = memref.load %arg1[%c66] : memref<98xf32, #tpu.memory_space<smem>>
    %c67 = arith.constant 67 : index
    %95 = memref.load %arg1[%c67] : memref<98xf32, #tpu.memory_space<smem>>
    %c68 = arith.constant 68 : index
    %96 = memref.load %arg1[%c68] : memref<98xf32, #tpu.memory_space<smem>>
    %c69 = arith.constant 69 : index
    %97 = memref.load %arg1[%c69] : memref<98xf32, #tpu.memory_space<smem>>
    %c70 = arith.constant 70 : index
    %98 = memref.load %arg1[%c70] : memref<98xf32, #tpu.memory_space<smem>>
    %c71 = arith.constant 71 : index
    %99 = memref.load %arg1[%c71] : memref<98xf32, #tpu.memory_space<smem>>
    %c72 = arith.constant 72 : index
    %100 = memref.load %arg1[%c72] : memref<98xf32, #tpu.memory_space<smem>>
    %c73 = arith.constant 73 : index
    %101 = memref.load %arg1[%c73] : memref<98xf32, #tpu.memory_space<smem>>
    %c74 = arith.constant 74 : index
    %102 = memref.load %arg1[%c74] : memref<98xf32, #tpu.memory_space<smem>>
    %c75 = arith.constant 75 : index
    %103 = memref.load %arg1[%c75] : memref<98xf32, #tpu.memory_space<smem>>
    %c76 = arith.constant 76 : index
    %104 = memref.load %arg1[%c76] : memref<98xf32, #tpu.memory_space<smem>>
    %c77 = arith.constant 77 : index
    %105 = memref.load %arg1[%c77] : memref<98xf32, #tpu.memory_space<smem>>
    %c78 = arith.constant 78 : index
    %106 = memref.load %arg1[%c78] : memref<98xf32, #tpu.memory_space<smem>>
    %c79 = arith.constant 79 : index
    %107 = memref.load %arg1[%c79] : memref<98xf32, #tpu.memory_space<smem>>
    %c80 = arith.constant 80 : index
    %108 = memref.load %arg1[%c80] : memref<98xf32, #tpu.memory_space<smem>>
    %c81 = arith.constant 81 : index
    %109 = memref.load %arg1[%c81] : memref<98xf32, #tpu.memory_space<smem>>
    %c82 = arith.constant 82 : index
    %110 = memref.load %arg1[%c82] : memref<98xf32, #tpu.memory_space<smem>>
    %c83 = arith.constant 83 : index
    %111 = memref.load %arg1[%c83] : memref<98xf32, #tpu.memory_space<smem>>
    %c84 = arith.constant 84 : index
    %112 = memref.load %arg1[%c84] : memref<98xf32, #tpu.memory_space<smem>>
    %c85 = arith.constant 85 : index
    %113 = memref.load %arg1[%c85] : memref<98xf32, #tpu.memory_space<smem>>
    %c86 = arith.constant 86 : index
    %114 = memref.load %arg1[%c86] : memref<98xf32, #tpu.memory_space<smem>>
    %c87 = arith.constant 87 : index
    %115 = memref.load %arg1[%c87] : memref<98xf32, #tpu.memory_space<smem>>
    %c88 = arith.constant 88 : index
    %116 = memref.load %arg1[%c88] : memref<98xf32, #tpu.memory_space<smem>>
    %c89 = arith.constant 89 : index
    %117 = memref.load %arg1[%c89] : memref<98xf32, #tpu.memory_space<smem>>
    %c90 = arith.constant 90 : index
    %118 = memref.load %arg1[%c90] : memref<98xf32, #tpu.memory_space<smem>>
    %c91 = arith.constant 91 : index
    %119 = memref.load %arg1[%c91] : memref<98xf32, #tpu.memory_space<smem>>
    %c92 = arith.constant 92 : index
    %120 = memref.load %arg1[%c92] : memref<98xf32, #tpu.memory_space<smem>>
    %c93 = arith.constant 93 : index
    %121 = memref.load %arg1[%c93] : memref<98xf32, #tpu.memory_space<smem>>
    %c94 = arith.constant 94 : index
    %122 = memref.load %arg1[%c94] : memref<98xf32, #tpu.memory_space<smem>>
    %c95 = arith.constant 95 : index
    %123 = memref.load %arg1[%c95] : memref<98xf32, #tpu.memory_space<smem>>
    %c96 = arith.constant 96 : index
    %124 = memref.load %arg1[%c96] : memref<98xf32, #tpu.memory_space<smem>>
    %c97 = arith.constant 97 : index
    %125 = memref.load %arg1[%c97] : memref<98xf32, #tpu.memory_space<smem>>
    %cst_29 = arith.constant 0.000000e+00 : f32
    %126 = vector.broadcast %cst_29 : f32 to vector<2x256xf32>
    %cst_30 = arith.constant 0.000000e+00 : f32
    %127 = vector.broadcast %cst_30 : f32 to vector<2x256xf32>
    %c0_31 = arith.constant 0 : index
    %c77_32 = arith.constant 77 : index
    %128 = vector.load %arg5[%c0_31, %c77_32] : memref<2x512xf32, #tpu.memory_space<vmem>>, vector<2x256xf32>
    %129 = vector.broadcast %28 : f32 to vector<2x256xf32>
    %130 = arith.mulf %129, %128 : vector<2x256xf32>
    %131 = arith.addf %127, %130 : vector<2x256xf32>
    %c0_33 = arith.constant 0 : index
    %c93_34 = arith.constant 93 : index
    %132 = vector.load %arg5[%c0_33, %c93_34] : memref<2x512xf32, #tpu.memory_space<vmem>>, vector<2x256xf32>
    %133 = vector.broadcast %35 : f32 to vector<2x256xf32>
    %134 = arith.mulf %133, %132 : vector<2x256xf32>
    %135 = arith.addf %131, %134 : vector<2x256xf32>
    %c0_35 = arith.constant 0 : index
    %c109 = arith.constant 109 : index
    %136 = vector.load %arg5[%c0_35, %c109] : memref<2x512xf32, #tpu.memory_space<vmem>>, vector<2x256xf32>
    %137 = vector.broadcast %42 : f32 to vector<2x256xf32>
    %138 = arith.mulf %137, %136 : vector<2x256xf32>
    %139 = arith.addf %135, %138 : vector<2x256xf32>
    %c0_36 = arith.constant 0 : index
    %c125 = arith.constant 125 : index
    %140 = vector.load %arg5[%c0_36, %c125] : memref<2x512xf32, #tpu.memory_space<vmem>>, vector<2x256xf32>
    %141 = vector.broadcast %49 : f32 to vector<2x256xf32>
    %142 = arith.mulf %141, %140 : vector<2x256xf32>
    %143 = arith.addf %139, %142 : vector<2x256xf32>
    %c0_37 = arith.constant 0 : index
    %c141 = arith.constant 141 : index
    %144 = vector.load %arg5[%c0_37, %c141] : memref<2x512xf32, #tpu.memory_space<vmem>>, vector<2x256xf32>
    %145 = vector.broadcast %56 : f32 to vector<2x256xf32>
    %146 = arith.mulf %145, %144 : vector<2x256xf32>
    %147 = arith.addf %143, %146 : vector<2x256xf32>
    %c0_38 = arith.constant 0 : index
    %c157 = arith.constant 157 : index
    %148 = vector.load %arg5[%c0_38, %c157] : memref<2x512xf32, #tpu.memory_space<vmem>>, vector<2x256xf32>
    %149 = vector.broadcast %63 : f32 to vector<2x256xf32>
    %150 = arith.mulf %149, %148 : vector<2x256xf32>
    %151 = arith.addf %147, %150 : vector<2x256xf32>
    %c0_39 = arith.constant 0 : index
    %c173 = arith.constant 173 : index
    %152 = vector.load %arg5[%c0_39, %c173] : memref<2x512xf32, #tpu.memory_space<vmem>>, vector<2x256xf32>
    %153 = vector.broadcast %70 : f32 to vector<2x256xf32>
    %154 = arith.mulf %153, %152 : vector<2x256xf32>
    %155 = arith.addf %151, %154 : vector<2x256xf32>
    %c0_40 = arith.constant 0 : index
    %c77_41 = arith.constant 77 : index
    %156 = vector.load %arg6[%c0_40, %c77_41] : memref<2x512xf32, #tpu.memory_space<vmem>>, vector<2x256xf32>
    %157 = vector.broadcast %77 : f32 to vector<2x256xf32>
    %158 = arith.mulf %157, %156 : vector<2x256xf32>
    %159 = arith.addf %155, %158 : vector<2x256xf32>
    %c0_42 = arith.constant 0 : index
    %c93_43 = arith.constant 93 : index
    %160 = vector.load %arg6[%c0_42, %c93_43] : memref<2x512xf32, #tpu.memory_space<vmem>>, vector<2x256xf32>
    %161 = vector.broadcast %84 : f32 to vector<2x256xf32>
    %162 = arith.mulf %161, %160 : vector<2x256xf32>
    %163 = arith.addf %159, %162 : vector<2x256xf32>
    %c0_44 = arith.constant 0 : index
    %c109_45 = arith.constant 109 : index
    %164 = vector.load %arg6[%c0_44, %c109_45] : memref<2x512xf32, #tpu.memory_space<vmem>>, vector<2x256xf32>
    %165 = vector.broadcast %91 : f32 to vector<2x256xf32>
    %166 = arith.mulf %165, %164 : vector<2x256xf32>
    %167 = arith.addf %163, %166 : vector<2x256xf32>
    %c0_46 = arith.constant 0 : index
    %c125_47 = arith.constant 125 : index
    %168 = vector.load %arg6[%c0_46, %c125_47] : memref<2x512xf32, #tpu.memory_space<vmem>>, vector<2x256xf32>
    %169 = vector.broadcast %98 : f32 to vector<2x256xf32>
    %170 = arith.mulf %169, %168 : vector<2x256xf32>
    %171 = arith.addf %167, %170 : vector<2x256xf32>
    %c0_48 = arith.constant 0 : index
    %c141_49 = arith.constant 141 : index
    %172 = vector.load %arg6[%c0_48, %c141_49] : memref<2x512xf32, #tpu.memory_space<vmem>>, vector<2x256xf32>
    %173 = vector.broadcast %105 : f32 to vector<2x256xf32>
    %174 = arith.mulf %173, %172 : vector<2x256xf32>
    %175 = arith.addf %171, %174 : vector<2x256xf32>
    %c0_50 = arith.constant 0 : index
    %c157_51 = arith.constant 157 : index
    %176 = vector.load %arg6[%c0_50, %c157_51] : memref<2x512xf32, #tpu.memory_space<vmem>>, vector<2x256xf32>
    %177 = vector.broadcast %112 : f32 to vector<2x256xf32>
    %178 = arith.mulf %177, %176 : vector<2x256xf32>
    %179 = arith.addf %175, %178 : vector<2x256xf32>
    %c0_52 = arith.constant 0 : index
    %c173_53 = arith.constant 173 : index
    %180 = vector.load %arg6[%c0_52, %c173_53] : memref<2x512xf32, #tpu.memory_space<vmem>>, vector<2x256xf32>
    %181 = vector.broadcast %119 : f32 to vector<2x256xf32>
    %182 = arith.mulf %181, %180 : vector<2x256xf32>
    %183 = arith.addf %179, %182 : vector<2x256xf32>
    %c0_54 = arith.constant 0 : index
    %c0_55 = arith.constant 0 : index
    %184 = vector.load %arg3[%c0_54, %c0_55] : memref<7x256xf32, #tpu.memory_space<vmem>>, vector<1x256xf32>
    %185 = vector.broadcast %184 : vector<1x256xf32> to vector<2x256xf32>
    %186 = arith.mulf %183, %185 : vector<2x256xf32>
    %187 = arith.addf %126, %186 : vector<2x256xf32>
    %cst_56 = arith.constant 0.000000e+00 : f32
    %188 = vector.broadcast %cst_56 : f32 to vector<2x256xf32>
    %c0_57 = arith.constant 0 : index
    %c78_58 = arith.constant 78 : index
    %189 = vector.load %arg5[%c0_57, %c78_58] : memref<2x512xf32, #tpu.memory_space<vmem>>, vector<2x256xf32>
    %190 = vector.broadcast %29 : f32 to vector<2x256xf32>
    %191 = arith.mulf %190, %189 : vector<2x256xf32>
    %192 = arith.addf %188, %191 : vector<2x256xf32>
    %c0_59 = arith.constant 0 : index
    %c94_60 = arith.constant 94 : index
    %193 = vector.load %arg5[%c0_59, %c94_60] : memref<2x512xf32, #tpu.memory_space<vmem>>, vector<2x256xf32>
    %194 = vector.broadcast %36 : f32 to vector<2x256xf32>
    %195 = arith.mulf %194, %193 : vector<2x256xf32>
    %196 = arith.addf %192, %195 : vector<2x256xf32>
    %c0_61 = arith.constant 0 : index
    %c110 = arith.constant 110 : index
    %197 = vector.load %arg5[%c0_61, %c110] : memref<2x512xf32, #tpu.memory_space<vmem>>, vector<2x256xf32>
    %198 = vector.broadcast %43 : f32 to vector<2x256xf32>
    %199 = arith.mulf %198, %197 : vector<2x256xf32>
    %200 = arith.addf %196, %199 : vector<2x256xf32>
    %c0_62 = arith.constant 0 : index
    %c126 = arith.constant 126 : index
    %201 = vector.load %arg5[%c0_62, %c126] : memref<2x512xf32, #tpu.memory_space<vmem>>, vector<2x256xf32>
    %202 = vector.broadcast %50 : f32 to vector<2x256xf32>
    %203 = arith.mulf %202, %201 : vector<2x256xf32>
    %204 = arith.addf %200, %203 : vector<2x256xf32>
    %c0_63 = arith.constant 0 : index
    %c142 = arith.constant 142 : index
    %205 = vector.load %arg5[%c0_63, %c142] : memref<2x512xf32, #tpu.memory_space<vmem>>, vector<2x256xf32>
    %206 = vector.broadcast %57 : f32 to vector<2x256xf32>
    %207 = arith.mulf %206, %205 : vector<2x256xf32>
    %208 = arith.addf %204, %207 : vector<2x256xf32>
    %c0_64 = arith.constant 0 : index
    %c158 = arith.constant 158 : index
    %209 = vector.load %arg5[%c0_64, %c158] : memref<2x512xf32, #tpu.memory_space<vmem>>, vector<2x256xf32>
    %210 = vector.broadcast %64 : f32 to vector<2x256xf32>
    %211 = arith.mulf %210, %209 : vector<2x256xf32>
    %212 = arith.addf %208, %211 : vector<2x256xf32>
    %c0_65 = arith.constant 0 : index
    %c174 = arith.constant 174 : index
    %213 = vector.load %arg5[%c0_65, %c174] : memref<2x512xf32, #tpu.memory_space<vmem>>, vector<2x256xf32>
    %214 = vector.broadcast %71 : f32 to vector<2x256xf32>
    %215 = arith.mulf %214, %213 : vector<2x256xf32>
    %216 = arith.addf %212, %215 : vector<2x256xf32>
    %c0_66 = arith.constant 0 : index
    %c78_67 = arith.constant 78 : index
    %217 = vector.load %arg6[%c0_66, %c78_67] : memref<2x512xf32, #tpu.memory_space<vmem>>, vector<2x256xf32>
    %218 = vector.broadcast %78 : f32 to vector<2x256xf32>
    %219 = arith.mulf %218, %217 : vector<2x256xf32>
    %220 = arith.addf %216, %219 : vector<2x256xf32>
    %c0_68 = arith.constant 0 : index
    %c94_69 = arith.constant 94 : index
    %221 = vector.load %arg6[%c0_68, %c94_69] : memref<2x512xf32, #tpu.memory_space<vmem>>, vector<2x256xf32>
    %222 = vector.broadcast %85 : f32 to vector<2x256xf32>
    %223 = arith.mulf %222, %221 : vector<2x256xf32>
    %224 = arith.addf %220, %223 : vector<2x256xf32>
    %c0_70 = arith.constant 0 : index
    %c110_71 = arith.constant 110 : index
    %225 = vector.load %arg6[%c0_70, %c110_71] : memref<2x512xf32, #tpu.memory_space<vmem>>, vector<2x256xf32>
    %226 = vector.broadcast %92 : f32 to vector<2x256xf32>
    %227 = arith.mulf %226, %225 : vector<2x256xf32>
    %228 = arith.addf %224, %227 : vector<2x256xf32>
    %c0_72 = arith.constant 0 : index
    %c126_73 = arith.constant 126 : index
    %229 = vector.load %arg6[%c0_72, %c126_73] : memref<2x512xf32, #tpu.memory_space<vmem>>, vector<2x256xf32>
    %230 = vector.broadcast %99 : f32 to vector<2x256xf32>
    %231 = arith.mulf %230, %229 : vector<2x256xf32>
    %232 = arith.addf %228, %231 : vector<2x256xf32>
    %c0_74 = arith.constant 0 : index
    %c142_75 = arith.constant 142 : index
    %233 = vector.load %arg6[%c0_74, %c142_75] : memref<2x512xf32, #tpu.memory_space<vmem>>, vector<2x256xf32>
    %234 = vector.broadcast %106 : f32 to vector<2x256xf32>
    %235 = arith.mulf %234, %233 : vector<2x256xf32>
    %236 = arith.addf %232, %235 : vector<2x256xf32>
    %c0_76 = arith.constant 0 : index
    %c158_77 = arith.constant 158 : index
    %237 = vector.load %arg6[%c0_76, %c158_77] : memref<2x512xf32, #tpu.memory_space<vmem>>, vector<2x256xf32>
    %238 = vector.broadcast %113 : f32 to vector<2x256xf32>
    %239 = arith.mulf %238, %237 : vector<2x256xf32>
    %240 = arith.addf %236, %239 : vector<2x256xf32>
    %c0_78 = arith.constant 0 : index
    %c174_79 = arith.constant 174 : index
    %241 = vector.load %arg6[%c0_78, %c174_79] : memref<2x512xf32, #tpu.memory_space<vmem>>, vector<2x256xf32>
    %242 = vector.broadcast %120 : f32 to vector<2x256xf32>
    %243 = arith.mulf %242, %241 : vector<2x256xf32>
    %244 = arith.addf %240, %243 : vector<2x256xf32>
    %c1_80 = arith.constant 1 : index
    %c0_81 = arith.constant 0 : index
    %245 = vector.load %arg3[%c1_80, %c0_81] : memref<7x256xf32, #tpu.memory_space<vmem>>, vector<1x256xf32>
    %246 = vector.broadcast %245 : vector<1x256xf32> to vector<2x256xf32>
    %247 = arith.mulf %244, %246 : vector<2x256xf32>
    %248 = arith.addf %187, %247 : vector<2x256xf32>
    %cst_82 = arith.constant 0.000000e+00 : f32
    %249 = vector.broadcast %cst_82 : f32 to vector<2x256xf32>
    %c0_83 = arith.constant 0 : index
    %c79_84 = arith.constant 79 : index
    %250 = vector.load %arg5[%c0_83, %c79_84] : memref<2x512xf32, #tpu.memory_space<vmem>>, vector<2x256xf32>
    %251 = vector.broadcast %30 : f32 to vector<2x256xf32>
    %252 = arith.mulf %251, %250 : vector<2x256xf32>
    %253 = arith.addf %249, %252 : vector<2x256xf32>
    %c0_85 = arith.constant 0 : index
    %c95_86 = arith.constant 95 : index
    %254 = vector.load %arg5[%c0_85, %c95_86] : memref<2x512xf32, #tpu.memory_space<vmem>>, vector<2x256xf32>
    %255 = vector.broadcast %37 : f32 to vector<2x256xf32>
    %256 = arith.mulf %255, %254 : vector<2x256xf32>
    %257 = arith.addf %253, %256 : vector<2x256xf32>
    %c0_87 = arith.constant 0 : index
    %c111 = arith.constant 111 : index
    %258 = vector.load %arg5[%c0_87, %c111] : memref<2x512xf32, #tpu.memory_space<vmem>>, vector<2x256xf32>
    %259 = vector.broadcast %44 : f32 to vector<2x256xf32>
    %260 = arith.mulf %259, %258 : vector<2x256xf32>
    %261 = arith.addf %257, %260 : vector<2x256xf32>
    %c0_88 = arith.constant 0 : index
    %c127 = arith.constant 127 : index
    %262 = vector.load %arg5[%c0_88, %c127] : memref<2x512xf32, #tpu.memory_space<vmem>>, vector<2x256xf32>
    %263 = vector.broadcast %51 : f32 to vector<2x256xf32>
    %264 = arith.mulf %263, %262 : vector<2x256xf32>
    %265 = arith.addf %261, %264 : vector<2x256xf32>
    %c0_89 = arith.constant 0 : index
    %c143 = arith.constant 143 : index
    %266 = vector.load %arg5[%c0_89, %c143] : memref<2x512xf32, #tpu.memory_space<vmem>>, vector<2x256xf32>
    %267 = vector.broadcast %58 : f32 to vector<2x256xf32>
    %268 = arith.mulf %267, %266 : vector<2x256xf32>
    %269 = arith.addf %265, %268 : vector<2x256xf32>
    %c0_90 = arith.constant 0 : index
    %c159 = arith.constant 159 : index
    %270 = vector.load %arg5[%c0_90, %c159] : memref<2x512xf32, #tpu.memory_space<vmem>>, vector<2x256xf32>
    %271 = vector.broadcast %65 : f32 to vector<2x256xf32>
    %272 = arith.mulf %271, %270 : vector<2x256xf32>
    %273 = arith.addf %269, %272 : vector<2x256xf32>
    %c0_91 = arith.constant 0 : index
    %c175 = arith.constant 175 : index
    %274 = vector.load %arg5[%c0_91, %c175] : memref<2x512xf32, #tpu.memory_space<vmem>>, vector<2x256xf32>
    %275 = vector.broadcast %72 : f32 to vector<2x256xf32>
    %276 = arith.mulf %275, %274 : vector<2x256xf32>
    %277 = arith.addf %273, %276 : vector<2x256xf32>
    %c0_92 = arith.constant 0 : index
    %c79_93 = arith.constant 79 : index
    %278 = vector.load %arg6[%c0_92, %c79_93] : memref<2x512xf32, #tpu.memory_space<vmem>>, vector<2x256xf32>
    %279 = vector.broadcast %79 : f32 to vector<2x256xf32>
    %280 = arith.mulf %279, %278 : vector<2x256xf32>
    %281 = arith.addf %277, %280 : vector<2x256xf32>
    %c0_94 = arith.constant 0 : index
    %c95_95 = arith.constant 95 : index
    %282 = vector.load %arg6[%c0_94, %c95_95] : memref<2x512xf32, #tpu.memory_space<vmem>>, vector<2x256xf32>
    %283 = vector.broadcast %86 : f32 to vector<2x256xf32>
    %284 = arith.mulf %283, %282 : vector<2x256xf32>
    %285 = arith.addf %281, %284 : vector<2x256xf32>
    %c0_96 = arith.constant 0 : index
    %c111_97 = arith.constant 111 : index
    %286 = vector.load %arg6[%c0_96, %c111_97] : memref<2x512xf32, #tpu.memory_space<vmem>>, vector<2x256xf32>
    %287 = vector.broadcast %93 : f32 to vector<2x256xf32>
    %288 = arith.mulf %287, %286 : vector<2x256xf32>
    %289 = arith.addf %285, %288 : vector<2x256xf32>
    %c0_98 = arith.constant 0 : index
    %c127_99 = arith.constant 127 : index
    %290 = vector.load %arg6[%c0_98, %c127_99] : memref<2x512xf32, #tpu.memory_space<vmem>>, vector<2x256xf32>
    %291 = vector.broadcast %100 : f32 to vector<2x256xf32>
    %292 = arith.mulf %291, %290 : vector<2x256xf32>
    %293 = arith.addf %289, %292 : vector<2x256xf32>
    %c0_100 = arith.constant 0 : index
    %c143_101 = arith.constant 143 : index
    %294 = vector.load %arg6[%c0_100, %c143_101] : memref<2x512xf32, #tpu.memory_space<vmem>>, vector<2x256xf32>
    %295 = vector.broadcast %107 : f32 to vector<2x256xf32>
    %296 = arith.mulf %295, %294 : vector<2x256xf32>
    %297 = arith.addf %293, %296 : vector<2x256xf32>
    %c0_102 = arith.constant 0 : index
    %c159_103 = arith.constant 159 : index
    %298 = vector.load %arg6[%c0_102, %c159_103] : memref<2x512xf32, #tpu.memory_space<vmem>>, vector<2x256xf32>
    %299 = vector.broadcast %114 : f32 to vector<2x256xf32>
    %300 = arith.mulf %299, %298 : vector<2x256xf32>
    %301 = arith.addf %297, %300 : vector<2x256xf32>
    %c0_104 = arith.constant 0 : index
    %c175_105 = arith.constant 175 : index
    %302 = vector.load %arg6[%c0_104, %c175_105] : memref<2x512xf32, #tpu.memory_space<vmem>>, vector<2x256xf32>
    %303 = vector.broadcast %121 : f32 to vector<2x256xf32>
    %304 = arith.mulf %303, %302 : vector<2x256xf32>
    %305 = arith.addf %301, %304 : vector<2x256xf32>
    %c2_106 = arith.constant 2 : index
    %c0_107 = arith.constant 0 : index
    %306 = vector.load %arg3[%c2_106, %c0_107] : memref<7x256xf32, #tpu.memory_space<vmem>>, vector<1x256xf32>
    %307 = vector.broadcast %306 : vector<1x256xf32> to vector<2x256xf32>
    %308 = arith.mulf %305, %307 : vector<2x256xf32>
    %309 = arith.addf %248, %308 : vector<2x256xf32>
    %cst_108 = arith.constant 0.000000e+00 : f32
    %310 = vector.broadcast %cst_108 : f32 to vector<2x256xf32>
    %c0_109 = arith.constant 0 : index
    %c80_110 = arith.constant 80 : index
    %311 = vector.load %arg5[%c0_109, %c80_110] : memref<2x512xf32, #tpu.memory_space<vmem>>, vector<2x256xf32>
    %312 = vector.broadcast %31 : f32 to vector<2x256xf32>
    %313 = arith.mulf %312, %311 : vector<2x256xf32>
    %314 = arith.addf %310, %313 : vector<2x256xf32>
    %c0_111 = arith.constant 0 : index
    %c96_112 = arith.constant 96 : index
    %315 = vector.load %arg5[%c0_111, %c96_112] : memref<2x512xf32, #tpu.memory_space<vmem>>, vector<2x256xf32>
    %316 = vector.broadcast %38 : f32 to vector<2x256xf32>
    %317 = arith.mulf %316, %315 : vector<2x256xf32>
    %318 = arith.addf %314, %317 : vector<2x256xf32>
    %c0_113 = arith.constant 0 : index
    %c112 = arith.constant 112 : index
    %319 = vector.load %arg5[%c0_113, %c112] : memref<2x512xf32, #tpu.memory_space<vmem>>, vector<2x256xf32>
    %320 = vector.broadcast %45 : f32 to vector<2x256xf32>
    %321 = arith.mulf %320, %319 : vector<2x256xf32>
    %322 = arith.addf %318, %321 : vector<2x256xf32>
    %c0_114 = arith.constant 0 : index
    %c128_115 = arith.constant 128 : index
    %323 = vector.load %arg5[%c0_114, %c128_115] : memref<2x512xf32, #tpu.memory_space<vmem>>, vector<2x256xf32>
    %324 = vector.broadcast %52 : f32 to vector<2x256xf32>
    %325 = arith.mulf %324, %323 : vector<2x256xf32>
    %326 = arith.addf %322, %325 : vector<2x256xf32>
    %c0_116 = arith.constant 0 : index
    %c144 = arith.constant 144 : index
    %327 = vector.load %arg5[%c0_116, %c144] : memref<2x512xf32, #tpu.memory_space<vmem>>, vector<2x256xf32>
    %328 = vector.broadcast %59 : f32 to vector<2x256xf32>
    %329 = arith.mulf %328, %327 : vector<2x256xf32>
    %330 = arith.addf %326, %329 : vector<2x256xf32>
    %c0_117 = arith.constant 0 : index
    %c160 = arith.constant 160 : index
    %331 = vector.load %arg5[%c0_117, %c160] : memref<2x512xf32, #tpu.memory_space<vmem>>, vector<2x256xf32>
    %332 = vector.broadcast %66 : f32 to vector<2x256xf32>
    %333 = arith.mulf %332, %331 : vector<2x256xf32>
    %334 = arith.addf %330, %333 : vector<2x256xf32>
    %c0_118 = arith.constant 0 : index
    %c176 = arith.constant 176 : index
    %335 = vector.load %arg5[%c0_118, %c176] : memref<2x512xf32, #tpu.memory_space<vmem>>, vector<2x256xf32>
    %336 = vector.broadcast %73 : f32 to vector<2x256xf32>
    %337 = arith.mulf %336, %335 : vector<2x256xf32>
    %338 = arith.addf %334, %337 : vector<2x256xf32>
    %c0_119 = arith.constant 0 : index
    %c80_120 = arith.constant 80 : index
    %339 = vector.load %arg6[%c0_119, %c80_120] : memref<2x512xf32, #tpu.memory_space<vmem>>, vector<2x256xf32>
    %340 = vector.broadcast %80 : f32 to vector<2x256xf32>
    %341 = arith.mulf %340, %339 : vector<2x256xf32>
    %342 = arith.addf %338, %341 : vector<2x256xf32>
    %c0_121 = arith.constant 0 : index
    %c96_122 = arith.constant 96 : index
    %343 = vector.load %arg6[%c0_121, %c96_122] : memref<2x512xf32, #tpu.memory_space<vmem>>, vector<2x256xf32>
    %344 = vector.broadcast %87 : f32 to vector<2x256xf32>
    %345 = arith.mulf %344, %343 : vector<2x256xf32>
    %346 = arith.addf %342, %345 : vector<2x256xf32>
    %c0_123 = arith.constant 0 : index
    %c112_124 = arith.constant 112 : index
    %347 = vector.load %arg6[%c0_123, %c112_124] : memref<2x512xf32, #tpu.memory_space<vmem>>, vector<2x256xf32>
    %348 = vector.broadcast %94 : f32 to vector<2x256xf32>
    %349 = arith.mulf %348, %347 : vector<2x256xf32>
    %350 = arith.addf %346, %349 : vector<2x256xf32>
    %c0_125 = arith.constant 0 : index
    %c128_126 = arith.constant 128 : index
    %351 = vector.load %arg6[%c0_125, %c128_126] : memref<2x512xf32, #tpu.memory_space<vmem>>, vector<2x256xf32>
    %352 = vector.broadcast %101 : f32 to vector<2x256xf32>
    %353 = arith.mulf %352, %351 : vector<2x256xf32>
    %354 = arith.addf %350, %353 : vector<2x256xf32>
    %c0_127 = arith.constant 0 : index
    %c144_128 = arith.constant 144 : index
    %355 = vector.load %arg6[%c0_127, %c144_128] : memref<2x512xf32, #tpu.memory_space<vmem>>, vector<2x256xf32>
    %356 = vector.broadcast %108 : f32 to vector<2x256xf32>
    %357 = arith.mulf %356, %355 : vector<2x256xf32>
    %358 = arith.addf %354, %357 : vector<2x256xf32>
    %c0_129 = arith.constant 0 : index
    %c160_130 = arith.constant 160 : index
    %359 = vector.load %arg6[%c0_129, %c160_130] : memref<2x512xf32, #tpu.memory_space<vmem>>, vector<2x256xf32>
    %360 = vector.broadcast %115 : f32 to vector<2x256xf32>
    %361 = arith.mulf %360, %359 : vector<2x256xf32>
    %362 = arith.addf %358, %361 : vector<2x256xf32>
    %c0_131 = arith.constant 0 : index
    %c176_132 = arith.constant 176 : index
    %363 = vector.load %arg6[%c0_131, %c176_132] : memref<2x512xf32, #tpu.memory_space<vmem>>, vector<2x256xf32>
    %364 = vector.broadcast %122 : f32 to vector<2x256xf32>
    %365 = arith.mulf %364, %363 : vector<2x256xf32>
    %366 = arith.addf %362, %365 : vector<2x256xf32>
    %c3_133 = arith.constant 3 : index
    %c0_134 = arith.constant 0 : index
    %367 = vector.load %arg3[%c3_133, %c0_134] : memref<7x256xf32, #tpu.memory_space<vmem>>, vector<1x256xf32>
    %368 = vector.broadcast %367 : vector<1x256xf32> to vector<2x256xf32>
    %369 = arith.mulf %366, %368 : vector<2x256xf32>
    %370 = arith.addf %309, %369 : vector<2x256xf32>
    %cst_135 = arith.constant 0.000000e+00 : f32
    %371 = vector.broadcast %cst_135 : f32 to vector<2x256xf32>
    %c0_136 = arith.constant 0 : index
    %c81_137 = arith.constant 81 : index
    %372 = vector.load %arg5[%c0_136, %c81_137] : memref<2x512xf32, #tpu.memory_space<vmem>>, vector<2x256xf32>
    %373 = vector.broadcast %32 : f32 to vector<2x256xf32>
    %374 = arith.mulf %373, %372 : vector<2x256xf32>
    %375 = arith.addf %371, %374 : vector<2x256xf32>
    %c0_138 = arith.constant 0 : index
    %c97_139 = arith.constant 97 : index
    %376 = vector.load %arg5[%c0_138, %c97_139] : memref<2x512xf32, #tpu.memory_space<vmem>>, vector<2x256xf32>
    %377 = vector.broadcast %39 : f32 to vector<2x256xf32>
    %378 = arith.mulf %377, %376 : vector<2x256xf32>
    %379 = arith.addf %375, %378 : vector<2x256xf32>
    %c0_140 = arith.constant 0 : index
    %c113 = arith.constant 113 : index
    %380 = vector.load %arg5[%c0_140, %c113] : memref<2x512xf32, #tpu.memory_space<vmem>>, vector<2x256xf32>
    %381 = vector.broadcast %46 : f32 to vector<2x256xf32>
    %382 = arith.mulf %381, %380 : vector<2x256xf32>
    %383 = arith.addf %379, %382 : vector<2x256xf32>
    %c0_141 = arith.constant 0 : index
    %c129 = arith.constant 129 : index
    %384 = vector.load %arg5[%c0_141, %c129] : memref<2x512xf32, #tpu.memory_space<vmem>>, vector<2x256xf32>
    %385 = vector.broadcast %53 : f32 to vector<2x256xf32>
    %386 = arith.mulf %385, %384 : vector<2x256xf32>
    %387 = arith.addf %383, %386 : vector<2x256xf32>
    %c0_142 = arith.constant 0 : index
    %c145 = arith.constant 145 : index
    %388 = vector.load %arg5[%c0_142, %c145] : memref<2x512xf32, #tpu.memory_space<vmem>>, vector<2x256xf32>
    %389 = vector.broadcast %60 : f32 to vector<2x256xf32>
    %390 = arith.mulf %389, %388 : vector<2x256xf32>
    %391 = arith.addf %387, %390 : vector<2x256xf32>
    %c0_143 = arith.constant 0 : index
    %c161 = arith.constant 161 : index
    %392 = vector.load %arg5[%c0_143, %c161] : memref<2x512xf32, #tpu.memory_space<vmem>>, vector<2x256xf32>
    %393 = vector.broadcast %67 : f32 to vector<2x256xf32>
    %394 = arith.mulf %393, %392 : vector<2x256xf32>
    %395 = arith.addf %391, %394 : vector<2x256xf32>
    %c0_144 = arith.constant 0 : index
    %c177 = arith.constant 177 : index
    %396 = vector.load %arg5[%c0_144, %c177] : memref<2x512xf32, #tpu.memory_space<vmem>>, vector<2x256xf32>
    %397 = vector.broadcast %74 : f32 to vector<2x256xf32>
    %398 = arith.mulf %397, %396 : vector<2x256xf32>
    %399 = arith.addf %395, %398 : vector<2x256xf32>
    %c0_145 = arith.constant 0 : index
    %c81_146 = arith.constant 81 : index
    %400 = vector.load %arg6[%c0_145, %c81_146] : memref<2x512xf32, #tpu.memory_space<vmem>>, vector<2x256xf32>
    %401 = vector.broadcast %81 : f32 to vector<2x256xf32>
    %402 = arith.mulf %401, %400 : vector<2x256xf32>
    %403 = arith.addf %399, %402 : vector<2x256xf32>
    %c0_147 = arith.constant 0 : index
    %c97_148 = arith.constant 97 : index
    %404 = vector.load %arg6[%c0_147, %c97_148] : memref<2x512xf32, #tpu.memory_space<vmem>>, vector<2x256xf32>
    %405 = vector.broadcast %88 : f32 to vector<2x256xf32>
    %406 = arith.mulf %405, %404 : vector<2x256xf32>
    %407 = arith.addf %403, %406 : vector<2x256xf32>
    %c0_149 = arith.constant 0 : index
    %c113_150 = arith.constant 113 : index
    %408 = vector.load %arg6[%c0_149, %c113_150] : memref<2x512xf32, #tpu.memory_space<vmem>>, vector<2x256xf32>
    %409 = vector.broadcast %95 : f32 to vector<2x256xf32>
    %410 = arith.mulf %409, %408 : vector<2x256xf32>
    %411 = arith.addf %407, %410 : vector<2x256xf32>
    %c0_151 = arith.constant 0 : index
    %c129_152 = arith.constant 129 : index
    %412 = vector.load %arg6[%c0_151, %c129_152] : memref<2x512xf32, #tpu.memory_space<vmem>>, vector<2x256xf32>
    %413 = vector.broadcast %102 : f32 to vector<2x256xf32>
    %414 = arith.mulf %413, %412 : vector<2x256xf32>
    %415 = arith.addf %411, %414 : vector<2x256xf32>
    %c0_153 = arith.constant 0 : index
    %c145_154 = arith.constant 145 : index
    %416 = vector.load %arg6[%c0_153, %c145_154] : memref<2x512xf32, #tpu.memory_space<vmem>>, vector<2x256xf32>
    %417 = vector.broadcast %109 : f32 to vector<2x256xf32>
    %418 = arith.mulf %417, %416 : vector<2x256xf32>
    %419 = arith.addf %415, %418 : vector<2x256xf32>
    %c0_155 = arith.constant 0 : index
    %c161_156 = arith.constant 161 : index
    %420 = vector.load %arg6[%c0_155, %c161_156] : memref<2x512xf32, #tpu.memory_space<vmem>>, vector<2x256xf32>
    %421 = vector.broadcast %116 : f32 to vector<2x256xf32>
    %422 = arith.mulf %421, %420 : vector<2x256xf32>
    %423 = arith.addf %419, %422 : vector<2x256xf32>
    %c0_157 = arith.constant 0 : index
    %c177_158 = arith.constant 177 : index
    %424 = vector.load %arg6[%c0_157, %c177_158] : memref<2x512xf32, #tpu.memory_space<vmem>>, vector<2x256xf32>
    %425 = vector.broadcast %123 : f32 to vector<2x256xf32>
    %426 = arith.mulf %425, %424 : vector<2x256xf32>
    %427 = arith.addf %423, %426 : vector<2x256xf32>
    %c4_159 = arith.constant 4 : index
    %c0_160 = arith.constant 0 : index
    %428 = vector.load %arg3[%c4_159, %c0_160] : memref<7x256xf32, #tpu.memory_space<vmem>>, vector<1x256xf32>
    %429 = vector.broadcast %428 : vector<1x256xf32> to vector<2x256xf32>
    %430 = arith.mulf %427, %429 : vector<2x256xf32>
    %431 = arith.addf %370, %430 : vector<2x256xf32>
    %cst_161 = arith.constant 0.000000e+00 : f32
    %432 = vector.broadcast %cst_161 : f32 to vector<2x256xf32>
    %c0_162 = arith.constant 0 : index
    %c82_163 = arith.constant 82 : index
    %433 = vector.load %arg5[%c0_162, %c82_163] : memref<2x512xf32, #tpu.memory_space<vmem>>, vector<2x256xf32>
    %434 = vector.broadcast %33 : f32 to vector<2x256xf32>
    %435 = arith.mulf %434, %433 : vector<2x256xf32>
    %436 = arith.addf %432, %435 : vector<2x256xf32>
    %c0_164 = arith.constant 0 : index
    %c98 = arith.constant 98 : index
    %437 = vector.load %arg5[%c0_164, %c98] : memref<2x512xf32, #tpu.memory_space<vmem>>, vector<2x256xf32>
    %438 = vector.broadcast %40 : f32 to vector<2x256xf32>
    %439 = arith.mulf %438, %437 : vector<2x256xf32>
    %440 = arith.addf %436, %439 : vector<2x256xf32>
    %c0_165 = arith.constant 0 : index
    %c114 = arith.constant 114 : index
    %441 = vector.load %arg5[%c0_165, %c114] : memref<2x512xf32, #tpu.memory_space<vmem>>, vector<2x256xf32>
    %442 = vector.broadcast %47 : f32 to vector<2x256xf32>
    %443 = arith.mulf %442, %441 : vector<2x256xf32>
    %444 = arith.addf %440, %443 : vector<2x256xf32>
    %c0_166 = arith.constant 0 : index
    %c130 = arith.constant 130 : index
    %445 = vector.load %arg5[%c0_166, %c130] : memref<2x512xf32, #tpu.memory_space<vmem>>, vector<2x256xf32>
    %446 = vector.broadcast %54 : f32 to vector<2x256xf32>
    %447 = arith.mulf %446, %445 : vector<2x256xf32>
    %448 = arith.addf %444, %447 : vector<2x256xf32>
    %c0_167 = arith.constant 0 : index
    %c146 = arith.constant 146 : index
    %449 = vector.load %arg5[%c0_167, %c146] : memref<2x512xf32, #tpu.memory_space<vmem>>, vector<2x256xf32>
    %450 = vector.broadcast %61 : f32 to vector<2x256xf32>
    %451 = arith.mulf %450, %449 : vector<2x256xf32>
    %452 = arith.addf %448, %451 : vector<2x256xf32>
    %c0_168 = arith.constant 0 : index
    %c162 = arith.constant 162 : index
    %453 = vector.load %arg5[%c0_168, %c162] : memref<2x512xf32, #tpu.memory_space<vmem>>, vector<2x256xf32>
    %454 = vector.broadcast %68 : f32 to vector<2x256xf32>
    %455 = arith.mulf %454, %453 : vector<2x256xf32>
    %456 = arith.addf %452, %455 : vector<2x256xf32>
    %c0_169 = arith.constant 0 : index
    %c178 = arith.constant 178 : index
    %457 = vector.load %arg5[%c0_169, %c178] : memref<2x512xf32, #tpu.memory_space<vmem>>, vector<2x256xf32>
    %458 = vector.broadcast %75 : f32 to vector<2x256xf32>
    %459 = arith.mulf %458, %457 : vector<2x256xf32>
    %460 = arith.addf %456, %459 : vector<2x256xf32>
    %c0_170 = arith.constant 0 : index
    %c82_171 = arith.constant 82 : index
    %461 = vector.load %arg6[%c0_170, %c82_171] : memref<2x512xf32, #tpu.memory_space<vmem>>, vector<2x256xf32>
    %462 = vector.broadcast %82 : f32 to vector<2x256xf32>
    %463 = arith.mulf %462, %461 : vector<2x256xf32>
    %464 = arith.addf %460, %463 : vector<2x256xf32>
    %c0_172 = arith.constant 0 : index
    %c98_173 = arith.constant 98 : index
    %465 = vector.load %arg6[%c0_172, %c98_173] : memref<2x512xf32, #tpu.memory_space<vmem>>, vector<2x256xf32>
    %466 = vector.broadcast %89 : f32 to vector<2x256xf32>
    %467 = arith.mulf %466, %465 : vector<2x256xf32>
    %468 = arith.addf %464, %467 : vector<2x256xf32>
    %c0_174 = arith.constant 0 : index
    %c114_175 = arith.constant 114 : index
    %469 = vector.load %arg6[%c0_174, %c114_175] : memref<2x512xf32, #tpu.memory_space<vmem>>, vector<2x256xf32>
    %470 = vector.broadcast %96 : f32 to vector<2x256xf32>
    %471 = arith.mulf %470, %469 : vector<2x256xf32>
    %472 = arith.addf %468, %471 : vector<2x256xf32>
    %c0_176 = arith.constant 0 : index
    %c130_177 = arith.constant 130 : index
    %473 = vector.load %arg6[%c0_176, %c130_177] : memref<2x512xf32, #tpu.memory_space<vmem>>, vector<2x256xf32>
    %474 = vector.broadcast %103 : f32 to vector<2x256xf32>
    %475 = arith.mulf %474, %473 : vector<2x256xf32>
    %476 = arith.addf %472, %475 : vector<2x256xf32>
    %c0_178 = arith.constant 0 : index
    %c146_179 = arith.constant 146 : index
    %477 = vector.load %arg6[%c0_178, %c146_179] : memref<2x512xf32, #tpu.memory_space<vmem>>, vector<2x256xf32>
    %478 = vector.broadcast %110 : f32 to vector<2x256xf32>
    %479 = arith.mulf %478, %477 : vector<2x256xf32>
    %480 = arith.addf %476, %479 : vector<2x256xf32>
    %c0_180 = arith.constant 0 : index
    %c162_181 = arith.constant 162 : index
    %481 = vector.load %arg6[%c0_180, %c162_181] : memref<2x512xf32, #tpu.memory_space<vmem>>, vector<2x256xf32>
    %482 = vector.broadcast %117 : f32 to vector<2x256xf32>
    %483 = arith.mulf %482, %481 : vector<2x256xf32>
    %484 = arith.addf %480, %483 : vector<2x256xf32>
    %c0_182 = arith.constant 0 : index
    %c178_183 = arith.constant 178 : index
    %485 = vector.load %arg6[%c0_182, %c178_183] : memref<2x512xf32, #tpu.memory_space<vmem>>, vector<2x256xf32>
    %486 = vector.broadcast %124 : f32 to vector<2x256xf32>
    %487 = arith.mulf %486, %485 : vector<2x256xf32>
    %488 = arith.addf %484, %487 : vector<2x256xf32>
    %c5_184 = arith.constant 5 : index
    %c0_185 = arith.constant 0 : index
    %489 = vector.load %arg3[%c5_184, %c0_185] : memref<7x256xf32, #tpu.memory_space<vmem>>, vector<1x256xf32>
    %490 = vector.broadcast %489 : vector<1x256xf32> to vector<2x256xf32>
    %491 = arith.mulf %488, %490 : vector<2x256xf32>
    %492 = arith.addf %431, %491 : vector<2x256xf32>
    %cst_186 = arith.constant 0.000000e+00 : f32
    %493 = vector.broadcast %cst_186 : f32 to vector<2x256xf32>
    %c0_187 = arith.constant 0 : index
    %c83_188 = arith.constant 83 : index
    %494 = vector.load %arg5[%c0_187, %c83_188] : memref<2x512xf32, #tpu.memory_space<vmem>>, vector<2x256xf32>
    %495 = vector.broadcast %34 : f32 to vector<2x256xf32>
    %496 = arith.mulf %495, %494 : vector<2x256xf32>
    %497 = arith.addf %493, %496 : vector<2x256xf32>
    %c0_189 = arith.constant 0 : index
    %c99 = arith.constant 99 : index
    %498 = vector.load %arg5[%c0_189, %c99] : memref<2x512xf32, #tpu.memory_space<vmem>>, vector<2x256xf32>
    %499 = vector.broadcast %41 : f32 to vector<2x256xf32>
    %500 = arith.mulf %499, %498 : vector<2x256xf32>
    %501 = arith.addf %497, %500 : vector<2x256xf32>
    %c0_190 = arith.constant 0 : index
    %c115 = arith.constant 115 : index
    %502 = vector.load %arg5[%c0_190, %c115] : memref<2x512xf32, #tpu.memory_space<vmem>>, vector<2x256xf32>
    %503 = vector.broadcast %48 : f32 to vector<2x256xf32>
    %504 = arith.mulf %503, %502 : vector<2x256xf32>
    %505 = arith.addf %501, %504 : vector<2x256xf32>
    %c0_191 = arith.constant 0 : index
    %c131 = arith.constant 131 : index
    %506 = vector.load %arg5[%c0_191, %c131] : memref<2x512xf32, #tpu.memory_space<vmem>>, vector<2x256xf32>
    %507 = vector.broadcast %55 : f32 to vector<2x256xf32>
    %508 = arith.mulf %507, %506 : vector<2x256xf32>
    %509 = arith.addf %505, %508 : vector<2x256xf32>
    %c0_192 = arith.constant 0 : index
    %c147 = arith.constant 147 : index
    %510 = vector.load %arg5[%c0_192, %c147] : memref<2x512xf32, #tpu.memory_space<vmem>>, vector<2x256xf32>
    %511 = vector.broadcast %62 : f32 to vector<2x256xf32>
    %512 = arith.mulf %511, %510 : vector<2x256xf32>
    %513 = arith.addf %509, %512 : vector<2x256xf32>
    %c0_193 = arith.constant 0 : index
    %c163 = arith.constant 163 : index
    %514 = vector.load %arg5[%c0_193, %c163] : memref<2x512xf32, #tpu.memory_space<vmem>>, vector<2x256xf32>
    %515 = vector.broadcast %69 : f32 to vector<2x256xf32>
    %516 = arith.mulf %515, %514 : vector<2x256xf32>
    %517 = arith.addf %513, %516 : vector<2x256xf32>
    %c0_194 = arith.constant 0 : index
    %c179 = arith.constant 179 : index
    %518 = vector.load %arg5[%c0_194, %c179] : memref<2x512xf32, #tpu.memory_space<vmem>>, vector<2x256xf32>
    %519 = vector.broadcast %76 : f32 to vector<2x256xf32>
    %520 = arith.mulf %519, %518 : vector<2x256xf32>
    %521 = arith.addf %517, %520 : vector<2x256xf32>
    %c0_195 = arith.constant 0 : index
    %c83_196 = arith.constant 83 : index
    %522 = vector.load %arg6[%c0_195, %c83_196] : memref<2x512xf32, #tpu.memory_space<vmem>>, vector<2x256xf32>
    %523 = vector.broadcast %83 : f32 to vector<2x256xf32>
    %524 = arith.mulf %523, %522 : vector<2x256xf32>
    %525 = arith.addf %521, %524 : vector<2x256xf32>
    %c0_197 = arith.constant 0 : index
    %c99_198 = arith.constant 99 : index
    %526 = vector.load %arg6[%c0_197, %c99_198] : memref<2x512xf32, #tpu.memory_space<vmem>>, vector<2x256xf32>
    %527 = vector.broadcast %90 : f32 to vector<2x256xf32>
    %528 = arith.mulf %527, %526 : vector<2x256xf32>
    %529 = arith.addf %525, %528 : vector<2x256xf32>
    %c0_199 = arith.constant 0 : index
    %c115_200 = arith.constant 115 : index
    %530 = vector.load %arg6[%c0_199, %c115_200] : memref<2x512xf32, #tpu.memory_space<vmem>>, vector<2x256xf32>
    %531 = vector.broadcast %97 : f32 to vector<2x256xf32>
    %532 = arith.mulf %531, %530 : vector<2x256xf32>
    %533 = arith.addf %529, %532 : vector<2x256xf32>
    %c0_201 = arith.constant 0 : index
    %c131_202 = arith.constant 131 : index
    %534 = vector.load %arg6[%c0_201, %c131_202] : memref<2x512xf32, #tpu.memory_space<vmem>>, vector<2x256xf32>
    %535 = vector.broadcast %104 : f32 to vector<2x256xf32>
    %536 = arith.mulf %535, %534 : vector<2x256xf32>
    %537 = arith.addf %533, %536 : vector<2x256xf32>
    %c0_203 = arith.constant 0 : index
    %c147_204 = arith.constant 147 : index
    %538 = vector.load %arg6[%c0_203, %c147_204] : memref<2x512xf32, #tpu.memory_space<vmem>>, vector<2x256xf32>
    %539 = vector.broadcast %111 : f32 to vector<2x256xf32>
    %540 = arith.mulf %539, %538 : vector<2x256xf32>
    %541 = arith.addf %537, %540 : vector<2x256xf32>
    %c0_205 = arith.constant 0 : index
    %c163_206 = arith.constant 163 : index
    %542 = vector.load %arg6[%c0_205, %c163_206] : memref<2x512xf32, #tpu.memory_space<vmem>>, vector<2x256xf32>
    %543 = vector.broadcast %118 : f32 to vector<2x256xf32>
    %544 = arith.mulf %543, %542 : vector<2x256xf32>
    %545 = arith.addf %541, %544 : vector<2x256xf32>
    %c0_207 = arith.constant 0 : index
    %c179_208 = arith.constant 179 : index
    %546 = vector.load %arg6[%c0_207, %c179_208] : memref<2x512xf32, #tpu.memory_space<vmem>>, vector<2x256xf32>
    %547 = vector.broadcast %125 : f32 to vector<2x256xf32>
    %548 = arith.mulf %547, %546 : vector<2x256xf32>
    %549 = arith.addf %545, %548 : vector<2x256xf32>
    %c6_209 = arith.constant 6 : index
    %c0_210 = arith.constant 0 : index
    %550 = vector.load %arg3[%c6_209, %c0_210] : memref<7x256xf32, #tpu.memory_space<vmem>>, vector<1x256xf32>
    %551 = vector.broadcast %550 : vector<1x256xf32> to vector<2x256xf32>
    %552 = arith.mulf %549, %551 : vector<2x256xf32>
    %553 = arith.addf %492, %552 : vector<2x256xf32>
    %554 = arith.negf %553 : vector<2x256xf32>
    %555 = math.exp %554 : vector<2x256xf32>
    %cst_211 = arith.constant 1.000000e+00 : f32
    %556 = vector.broadcast %cst_211 : f32 to vector<2x256xf32>
    %557 = arith.addf %556, %555 : vector<2x256xf32>
    %558 = arith.divf %556, %557 : vector<2x256xf32>
    %559 = vector.extract_strided_slice %558 {offsets = [0, 0], sizes = [1, 256], strides = [1, 1]} : vector<2x256xf32> to vector<1x256xf32>
    %560 = vector.shape_cast %559 : vector<1x256xf32> to vector<1x256xf32>
    %561 = vector.broadcast %560 : vector<1x256xf32> to vector<4x256xf32>
    %c0_212 = arith.constant 0 : index
    %c0_213 = arith.constant 0 : index
    %c0_214 = arith.constant 0 : index
    %562 = vector.load %arg2[%c0_212, %c0_213, %c0_214] : memref<2x4x256xf32, #tpu.memory_space<vmem>>, vector<1x4x256xf32>
    %563 = vector.shape_cast %562 : vector<1x4x256xf32> to vector<4x256xf32>
    %564 = arith.mulf %563, %561 : vector<4x256xf32>
    %c0_215 = arith.constant 0 : index
    %c0_216 = arith.constant 0 : index
    %c0_217 = arith.constant 0 : index
    %565 = vector.load %arg4[%c0_215, %c0_216, %c0_217] : memref<2x4x256xf32, #tpu.memory_space<vmem>>, vector<1x4x256xf32>
    %566 = vector.shape_cast %565 : vector<1x4x256xf32> to vector<4x256xf32>
    %567 = vector.shape_cast %564 : vector<4x256xf32> to vector<1x4x256xf32>
    tpu.vector_store %arg4[%c0_215, %c0_216, %c0_217], %567 {strides = array<i32>} : memref<2x4x256xf32, #tpu.memory_space<vmem>>, vector<1x4x256xf32>,
    %568 = vector.extract_strided_slice %558 {offsets = [1, 0], sizes = [1, 256], strides = [1, 1]} : vector<2x256xf32> to vector<1x256xf32>
    %569 = vector.shape_cast %568 : vector<1x256xf32> to vector<1x256xf32>
    %570 = vector.broadcast %569 : vector<1x256xf32> to vector<4x256xf32>
    %c1_218 = arith.constant 1 : index
    %c0_219 = arith.constant 0 : index
    %c0_220 = arith.constant 0 : index
    %571 = vector.load %arg2[%c1_218, %c0_219, %c0_220] : memref<2x4x256xf32, #tpu.memory_space<vmem>>, vector<1x4x256xf32>
    %572 = vector.shape_cast %571 : vector<1x4x256xf32> to vector<4x256xf32>
    %573 = arith.mulf %572, %570 : vector<4x256xf32>
    %c1_221 = arith.constant 1 : index
    %c0_222 = arith.constant 0 : index
    %c0_223 = arith.constant 0 : index
    %574 = vector.load %arg4[%c1_221, %c0_222, %c0_223] : memref<2x4x256xf32, #tpu.memory_space<vmem>>, vector<1x4x256xf32>
    %575 = vector.shape_cast %574 : vector<1x4x256xf32> to vector<4x256xf32>
    %576 = vector.shape_cast %573 : vector<4x256xf32> to vector<1x4x256xf32>
    tpu.vector_store %arg4[%c1_221, %c0_222, %c0_223], %576 {strides = array<i32>} : memref<2x4x256xf32, #tpu.memory_space<vmem>>, vector<1x4x256xf32>,
    return
  }
  func.func @transform_0(%arg0: i32, %arg1: memref<98xf32, #tpu.memory_space<smem>>) -> (i32, i32, i32) {
    %c0_i32 = arith.constant 0 : i32
    %c0_i32_0 = arith.constant 0 : i32
    %c0_i32_1 = arith.constant 0 : i32
    return %arg0, %c0_i32, %c0_i32_0 : i32, i32, i32
  }
  func.func @transform_1(%arg0: i32, %arg1: memref<98xf32, #tpu.memory_space<smem>>) -> (i32, i32) {
    %c0_i32 = arith.constant 0 : i32
    %c0_i32_0 = arith.constant 0 : i32
    %c0_i32_1 = arith.constant 0 : i32
    return %c0_i32, %c0_i32_0 : i32, i32
  }
  func.func @transform_2(%arg0: i32, %arg1: memref<98xf32, #tpu.memory_space<smem>>) -> (i32, i32, i32) {
    %c0_i32 = arith.constant 0 : i32
    %c0_i32_0 = arith.constant 0 : i32
    %c0_i32_1 = arith.constant 0 : i32
    return %arg0, %c0_i32, %c0_i32_0 : i32, i32, i32
  }
}

</mosaic_0001>

<llo_original>
// kernel: tpu_custom_call.1
$region0: #{tpu_custom_call.1}
  #allocation0 [shape = 'u32[]', space=smem, size = 0x4, offset = 0x4, fixed_abs, tag = 'smem constant byte address 0x4 - core index']
  #allocation1 [shape = 'u32[144,128]{1,0:T(1,128)}', space=vmem, size = 0x12000, scoped, tag = 'internal scratch']
  #allocation2 [shape = 'f32[2,512]{1,0:T(2,128)}', space=vmem, size = 0x1000, scoped, tag = 'scratch operand']
  #allocation3 [shape = 'f32[2,512]{1,0:T(2,128)}', space=vmem, size = 0x1000, scoped, tag = 'scratch operand']
  #allocation4 [shape = 's32[1]{0}', space=sflag, size = 0x4, scoped, tag = 'scoped memory for tpu_custom_call.1']
  #allocation5 [shape = 'u8[512]{0}', space=smem, size = 0x200, scoped, tag = 'prefetched SMEM operand 0']
  %s0 = inlined_call_operand.hbm [shape: f32[98], index: 0, kind: input, shape index: {}]
  %s1 = inlined_call_operand.hbm [shape: f32[2,4,256], index: 1, kind: input, shape index: {}]
  %s2 = inlined_call_operand.hbm [shape: f32[7,256], index: 2, kind: input, shape index: {}]
  %s3 = inlined_call_operand.hbm [shape: f32[2,4,256], index: 3, kind: output, shape index: {}]
  %s4 = sld [smem:[#allocation0]]
  $region26: #{tpu_custom_call.1} parent=0
    _
  %s6 = ssub.s32 1, %s4
  %s7 = scalar_select 0, %s6, %s4
  %9 = dma.hbm_to_smem %s0, 16, [#allocation5], [#allocation4]
  %10 = dma.done [#allocation4], 16
  %11 = sfence
  $region1: #{tpu_custom_call.1} parent=0
    #allocation6 [shape = 'u8[8192]{0}', space=vmem, size = 0x2000, scoped, tag = 'input window, operand 1, single buffered']
    #allocation7 [shape = 's32[1]{0}', space=sflag, size = 0x4, scoped, tag = 'scoped memory for tpu_custom_call.1']
    #allocation8 [shape = 's32[1]{0}', space=sflag, size = 0x4, scoped, tag = 'scoped memory for tpu_custom_call.1']
    #allocation9 [shape = 'u8[8192]{0}', space=vmem, size = 0x2000, scoped, tag = 'input window, operand 2, single buffered']
    #allocation10 [shape = 's32[1]{0}', space=sflag, size = 0x4, scoped, tag = 'scoped memory for tpu_custom_call.1']
    #allocation11 [shape = 'u8[8192]{0}', space=vmem, size = 0x2000, scoped, tag = 'output window, operand 0, single buffered']
    %12 = vsyncpa [#allocation7], 0
    %13 = vsyncpa [#allocation10], 0
    %14 = vsyncpa [#allocation8], 0
    // Predicated region
    $region2: #{tpu_custom_call.1} parent=1 // pred_check
      _
    $region3: #{tpu_custom_call.1} parent=1 // pred_check_branch
      %16 = sbr.rel (0) target = $region5
    $region4: #{tpu_custom_call.1} parent=1 // pred_region
      %s18 = ssub.s32 256, 256
      %19 = vsyncadd [#allocation7], %s18
      %s20 = sshll.u32 [#allocation6], 4
      %s21 = int_to_ptr.vmem [resolvable:$true] %s20
      %26 = dma.hbm_to_vmem [thread:$0]  %s1, 256, %s21, [#allocation7], 128, 128, 8
    $region5: #{tpu_custom_call.1} parent=1 // pred_fallthru
      _
    // Predicated region
    $region6: #{tpu_custom_call.1} parent=1 // pred_check
      _
    $region7: #{tpu_custom_call.1} parent=1 // pred_check_branch
      %28 = sbr.rel (0) target = $region9
    $region8: #{tpu_custom_call.1} parent=1 // pred_region
      %s30 = ssub.s32 256, 256
      %31 = vsyncadd [#allocation10], %s30
      %s33 = sshll.u32 [#allocation9], 4
      %s34 = int_to_ptr.vmem [resolvable:$true] %s33
      %36 = dma.hbm_to_vmem [thread:$0]  %s2, 256, %s34, [#allocation10]
    $region9: #{tpu_custom_call.1} parent=1 // pred_fallthru
      _
    // Predicated region
    $region10: #{tpu_custom_call.1} parent=1 // pred_check
      _
    $region11: #{tpu_custom_call.1} parent=1 // pred_check_branch
      %38 = sbr.rel (0) target = $region13
    $region12: #{tpu_custom_call.1} parent=1 // pred_region
      %39 = dma.done [#allocation7], 256
    $region13: #{tpu_custom_call.1} parent=1 // pred_fallthru
      _
    // Predicated region
    $region14: #{tpu_custom_call.1} parent=1 // pred_check
      _
    $region15: #{tpu_custom_call.1} parent=1 // pred_check_branch
      %41 = sbr.rel (0) target = $region17
    $region16: #{tpu_custom_call.1} parent=1 // pred_region
      %42 = dma.done [#allocation10], 256
    $region17: #{tpu_custom_call.1} parent=1 // pred_fallthru
      _
    %43 = vst [vmem:[#allocation2] sm:$0x3] 0.0
    %44 = vst [vmem:[#allocation2 + $0x6] sm:$0x3] 0.0
    %45 = vst [vmem:[#allocation3] sm:$0x3] 0.0
    %46 = vst [vmem:[#allocation3 + $0x6] sm:$0x3] 0.0
    %v47 = vld [vmem:[#allocation6] sm:$0xff]
    %v49 = vcombine.high %v47, %v47
    %vm51 = vcmask 1043456
    %v52 = vsel %vm51, %v47, 0.0
    %v53 = vrot.slane %v52, 4
    %v54 = vadd.f32 %v52, %v53
    %v55 = vrot.slane %v54, 2
    %v56 = vadd.f32 %v54, %v55
    %v57 = vrot.slane %v56, 1
    %v58 = vadd.f32 %v56, %v57
    %v59 = vsel %vm51, %v49, 0.0
    %v60 = vrot.slane %v59, 4
    %v61 = vadd.f32 %v59, %v60
    %v62 = vrot.slane %v61, 2
    %v63 = vadd.f32 %v61, %v62
    %v64 = vrot.slane %v63, 1
    %v65 = vadd.f32 %v63, %v64
    %v66 = vsel %vm51, %v47, -inf
    %v67 = vrot.slane %v66, 4
    %v68 = vmax.f32 %v66, %v67
    %v69 = vrot.slane %v68, 2
    %v70 = vmax.f32 %v68, %v69
    %v71 = vrot.slane %v70, 1
    %v72 = vmax.f32 %v70, %v71
    %v73 = vsel %vm51, %v49, -inf
    %v74 = vrot.slane %v73, 4
    %v75 = vmax.f32 %v73, %v74
    %v76 = vrot.slane %v75, 2
    %v77 = vmax.f32 %v75, %v76
    %v78 = vrot.slane %v77, 1
    %v79 = vmax.f32 %v77, %v78
    %v80 = vmul.f32 %v58, 0.25
    %v81 = vmul.f32 %v65, 0.25
    %v84 = vcombine.low %v80, %v81
    %v86 = vunpack.c.l.s4 1966171168
    %v87 = vunpack.c.0.s8 %v86
    %v88 = vlaneseq
    %v89 = vshrl.u32 %v88, 7
    %v90 = vsub.s32 %v87, %v89
    %v91 = vrot.slane %v84, %v90
    %v93 = vunpack.c.l.s4 1966171168
    %v94 = vunpack.c.0.s8 %v93
    %v95 = vlaneseq
    %v96 = vshrl.u32 %v95, 7
    %v97 = vsub.s32 %v94, %v96
    %v98 = vrot.slane %v91, %v97
    %v100 = vlaneseq
    %vm101 = vcmp.ge.s32.totalorder %v100, 0
    %vm102 = vcmp.lt.s32.totalorder %v100, 256
    %vm103 = vmand %vm101, %vm102
    %s104 = scalar_lea.vmem [#allocation2], 2
    %105 = vst.msk [vmem:[%s104] ss:$2 sm:$0x3] %vm103, %v98
    %v108 = vcombine.low %v72, %v79
    %v110 = vunpack.c.l.s4 1966171168
    %v111 = vunpack.c.0.s8 %v110
    %v112 = vlaneseq
    %v113 = vshrl.u32 %v112, 7
    %v114 = vsub.s32 %v111, %v113
    %v115 = vrot.slane %v108, %v114
    %v117 = vunpack.c.l.s4 1966171168
    %v118 = vunpack.c.0.s8 %v117
    %v119 = vlaneseq
    %v120 = vshrl.u32 %v119, 7
    %v121 = vsub.s32 %v118, %v120
    %v122 = vrot.slane %v115, %v121
    %s124 = scalar_lea.vmem [#allocation3], 2
    %125 = vst.msk [vmem:[%s124] ss:$2 sm:$0x3] %vm103, %v122
    %s126 = scalar_lea.vmem [#allocation6], 8
    %v127 = vld [vmem:[%s126] sm:$0xff]
    %v129 = vcombine.high %v127, %v127
    %v131 = vsel %vm51, %v127, 0.0
    %v132 = vrot.slane %v131, 4
    %v133 = vadd.f32 %v131, %v132
    %v134 = vrot.slane %v133, 2
    %v135 = vadd.f32 %v133, %v134
    %v136 = vrot.slane %v135, 1
    %v137 = vadd.f32 %v135, %v136
    %v138 = vsel %vm51, %v129, 0.0
    %v139 = vrot.slane %v138, 4
    %v140 = vadd.f32 %v138, %v139
    %v141 = vrot.slane %v140, 2
    %v142 = vadd.f32 %v140, %v141
    %v143 = vrot.slane %v142, 1
    %v144 = vadd.f32 %v142, %v143
    %v145 = vsel %vm51, %v127, -inf
    %v146 = vrot.slane %v145, 4
    %v147 = vmax.f32 %v145, %v146
    %v148 = vrot.slane %v147, 2
    %v149 = vmax.f32 %v147, %v148
    %v150 = vrot.slane %v149, 1
    %v151 = vmax.f32 %v149, %v150
    %v152 = vsel %vm51, %v129, -inf
    %v153 = vrot.slane %v152, 4
    %v154 = vmax.f32 %v152, %v153
    %v155 = vrot.slane %v154, 2
    %v156 = vmax.f32 %v154, %v155
    %v157 = vrot.slane %v156, 1
    %v158 = vmax.f32 %v156, %v157
    %v159 = vmul.f32 %v137, 0.25
    %v160 = vmul.f32 %v144, 0.25
    %v163 = vcombine.low %v159, %v160
    %v165 = vunpack.c.l.s4 1966171168
    %v166 = vunpack.c.0.s8 %v165
    %v167 = vlaneseq
    %v168 = vshrl.u32 %v167, 7
    %v169 = vsub.s32 %v166, %v168
    %v170 = vrot.slane %v163, %v169
    %v172 = vunpack.c.l.s4 1966171168
    %v173 = vunpack.c.0.s8 %v172
    %v174 = vlaneseq
    %v175 = vshrl.u32 %v174, 7
    %v176 = vsub.s32 %v173, %v175
    %v177 = vrot.slane %v170, %v176
    %s179 = scalar_lea.vmem [#allocation2], 3
    %180 = vst.msk [vmem:[%s179] ss:$2 sm:$0x3] %vm103, %v177
    %v183 = vcombine.low %v151, %v158
    %v185 = vunpack.c.l.s4 1966171168
    %v186 = vunpack.c.0.s8 %v185
    %v187 = vlaneseq
    %v188 = vshrl.u32 %v187, 7
    %v189 = vsub.s32 %v186, %v188
    %v190 = vrot.slane %v183, %v189
    %v192 = vunpack.c.l.s4 1966171168
    %v193 = vunpack.c.0.s8 %v192
    %v194 = vlaneseq
    %v195 = vshrl.u32 %v194, 7
    %v196 = vsub.s32 %v193, %v195
    %v197 = vrot.slane %v190, %v196
    %s199 = scalar_lea.vmem [#allocation3], 3
    %200 = vst.msk [vmem:[%s199] ss:$2 sm:$0x3] %vm103, %v197
    %s201 = sld [smem:[#allocation5]]
    %s202 = sld [smem:[#allocation5 + $0x1]]
    %s203 = sld [smem:[#allocation5 + $0x2]]
    %s204 = sld [smem:[#allocation5 + $0x3]]
    %s205 = sld [smem:[#allocation5 + $0x4]]
    %s206 = sld [smem:[#allocation5 + $0x5]]
    %s207 = sld [smem:[#allocation5 + $0x6]]
    %s208 = sld [smem:[#allocation5 + $0x7]]
    %s209 = sld [smem:[#allocation5 + $0x8]]
    %s210 = sld [smem:[#allocation5 + $0x9]]
    %s211 = sld [smem:[#allocation5 + $0xa]]
    %s212 = sld [smem:[#allocation5 + $0xb]]
    %s213 = sld [smem:[#allocation5 + $0xc]]
    %s214 = sld [smem:[#allocation5 + $0xd]]
    %s215 = sld [smem:[#allocation5 + $0xe]]
    %s216 = sld [smem:[#allocation5 + $0xf]]
    %s217 = sld [smem:[#allocation5 + $0x10]]
    %s218 = sld [smem:[#allocation5 + $0x11]]
    %s219 = sld [smem:[#allocation5 + $0x12]]
    %s220 = sld [smem:[#allocation5 + $0x13]]
    %s221 = sld [smem:[#allocation5 + $0x14]]
    %s222 = sld [smem:[#allocation5 + $0x15]]
    %s223 = sld [smem:[#allocation5 + $0x16]]
    %s224 = sld [smem:[#allocation5 + $0x17]]
    %s225 = sld [smem:[#allocation5 + $0x18]]
    %s226 = sld [smem:[#allocation5 + $0x19]]
    %s227 = sld [smem:[#allocation5 + $0x1a]]
    %s228 = sld [smem:[#allocation5 + $0x1b]]
    %s229 = sld [smem:[#allocation5 + $0x1c]]
    %s230 = sld [smem:[#allocation5 + $0x1d]]
    %s231 = sld [smem:[#allocation5 + $0x1e]]
    %s232 = sld [smem:[#allocation5 + $0x1f]]
    %s233 = sld [smem:[#allocation5 + $0x20]]
    %s234 = sld [smem:[#allocation5 + $0x21]]
    %s235 = sld [smem:[#allocation5 + $0x22]]
    %s236 = sld [smem:[#allocation5 + $0x23]]
    %s237 = sld [smem:[#allocation5 + $0x24]]
    %s238 = sld [smem:[#allocation5 + $0x25]]
    %s239 = sld [smem:[#allocation5 + $0x26]]
    %s240 = sld [smem:[#allocation5 + $0x27]]
    %s241 = sld [smem:[#allocation5 + $0x28]]
    %s242 = sld [smem:[#allocation5 + $0x29]]
    %s243 = sld [smem:[#allocation5 + $0x2a]]
    %s244 = sld [smem:[#allocation5 + $0x2b]]
    %s245 = sld [smem:[#allocation5 + $0x2c]]
    %s246 = sld [smem:[#allocation5 + $0x2d]]
    %s247 = sld [smem:[#allocation5 + $0x2e]]
    %s248 = sld [smem:[#allocation5 + $0x2f]]
    %s249 = sld [smem:[#allocation5 + $0x30]]
    %s250 = sld [smem:[#allocation5 + $0x31]]
    %s251 = sld [smem:[#allocation5 + $0x32]]
    %s252 = sld [smem:[#allocation5 + $0x33]]
    %s253 = sld [smem:[#allocation5 + $0x34]]
    %s254 = sld [smem:[#allocation5 + $0x35]]
    %s255 = sld [smem:[#allocation5 + $0x36]]
    %s256 = sld [smem:[#allocation5 + $0x37]]
    %s257 = sld [smem:[#allocation5 + $0x38]]
    %s258 = sld [smem:[#allocation5 + $0x39]]
    %s259 = sld [smem:[#allocation5 + $0x3a]]
    %s260 = sld [smem:[#allocation5 + $0x3b]]
    %s261 = sld [smem:[#allocation5 + $0x3c]]
    %s262 = sld [smem:[#allocation5 + $0x3d]]
    %s263 = sld [smem:[#allocation5 + $0x3e]]
    %s264 = sld [smem:[#allocation5 + $0x3f]]
    %s265 = sld [smem:[#allocation5 + $0x40]]
    %s266 = sld [smem:[#allocation5 + $0x41]]
    %s267 = sld [smem:[#allocation5 + $0x42]]
    %s268 = sld [smem:[#allocation5 + $0x43]]
    %s269 = sld [smem:[#allocation5 + $0x44]]
    %s270 = sld [smem:[#allocation5 + $0x45]]
    %s271 = sld [smem:[#allocation5 + $0x46]]
    %s272 = sld [smem:[#allocation5 + $0x47]]
    %s273 = sld [smem:[#allocation5 + $0x48]]
    %s274 = sld [smem:[#allocation5 + $0x49]]
    %s275 = sld [smem:[#allocation5 + $0x4a]]
    %s276 = sld [smem:[#allocation5 + $0x4b]]
    %s277 = sld [smem:[#allocation5 + $0x4c]]
    %s278 = sld [smem:[#allocation5 + $0x4d]]
    %s279 = sld [smem:[#allocation5 + $0x4e]]
    %s280 = sld [smem:[#allocation5 + $0x4f]]
    %s281 = sld [smem:[#allocation5 + $0x50]]
    %s282 = sld [smem:[#allocation5 + $0x51]]
    %s283 = sld [smem:[#allocation5 + $0x52]]
    %s284 = sld [smem:[#allocation5 + $0x53]]
    %s285 = sld [smem:[#allocation5 + $0x54]]
    %s286 = sld [smem:[#allocation5 + $0x55]]
    %s287 = sld [smem:[#allocation5 + $0x56]]
    %s288 = sld [smem:[#allocation5 + $0x57]]
    %s289 = sld [smem:[#allocation5 + $0x58]]
    %s290 = sld [smem:[#allocation5 + $0x59]]
    %s291 = sld [smem:[#allocation5 + $0x5a]]
    %s292 = sld [smem:[#allocation5 + $0x5b]]
    %s293 = sld [smem:[#allocation5 + $0x5c]]
    %s294 = sld [smem:[#allocation5 + $0x5d]]
    %s295 = sld [smem:[#allocation5 + $0x5e]]
    %s296 = sld [smem:[#allocation5 + $0x5f]]
    %s297 = sld [smem:[#allocation5 + $0x60]]
    %s298 = sld [smem:[#allocation5 + $0x61]]
    %v299 = vld [vmem:[#allocation2] sm:$0x3f]
    %v300 = vstv %s201
    %v301 = vmul.f32 %v300, %v299
    %v302 = vadd.f32 %v301, 0.0
    %v303 = vstv %s208
    %v304 = vmul.f32 %v303, %v299
    %306 = vrot.lane.b32.xlu0 %v304, 112
    %v307 = vpop.permute.xlu0 %306
    %v308 = vrot.slane %v307, 2
    %vm309 = vcmask 916480
    %v310 = vsel %vm309, %v307, %v308
    %v312 = vadd.f32 %v302, %v310
    %v313 = vstv %s215
    %v314 = vmul.f32 %v313, %v299
    %316 = vrot.lane.b32.xlu0 %v314, 96
    %v317 = vpop.permute.xlu0 %316
    %v318 = vrot.slane %v317, 2
    %vm319 = vcmask 785408
    %v320 = vsel %vm319, %v317, %v318
    %v322 = vadd.f32 %v312, %v320
    %v323 = vstv %s222
    %v324 = vmul.f32 %v323, %v299
    %326 = vrot.lane.b32.xlu0 %v324, 80
    %v327 = vpop.permute.xlu0 %326
    %v328 = vrot.slane %v327, 2
    %vm329 = vcmask 654336
    %v330 = vsel %vm329, %v327, %v328
    %v332 = vadd.f32 %v322, %v330
    %v333 = vld [vmem:[#allocation2 + $0x2] sm:$0x3f]
    %v334 = vstv %s229
    %v335 = vmul.f32 %v334, %v333
    %337 = vrot.lane.b32.xlu0 %v335, 64
    %v338 = vpop.permute.xlu0 %337
    %v339 = vrot.slane %v338, 6
    %vm340 = vcmask 523264
    %v341 = vsel %vm340, %v339, %v338
    %v343 = vadd.f32 %v332, %v341
    %v344 = vstv %s236
    %v345 = vmul.f32 %v344, %v333
    %347 = vrot.lane.b32.xlu0 %v345, 48
    %v348 = vpop.permute.xlu0 %347
    %v349 = vrot.slane %v348, 6
    %vm350 = vcmask 392192
    %v351 = vsel %vm350, %v349, %v348
    %v353 = vadd.f32 %v343, %v351
    %v354 = vstv %s243
    %v355 = vmul.f32 %v354, %v333
    %357 = vrot.lane.b32.xlu0 %v355, 32
    %v358 = vpop.permute.xlu0 %357
    %v359 = vrot.slane %v358, 6
    %vm360 = vcmask 261120
    %v361 = vsel %vm360, %v359, %v358
    %v363 = vadd.f32 %v353, %v361
    %v364 = vld [vmem:[#allocation3] sm:$0x3f]
    %v365 = vstv %s250
    %v366 = vmul.f32 %v365, %v364
    %v367 = vadd.f32 %v363, %v366
    %v368 = vstv %s257
    %v369 = vmul.f32 %v368, %v364
    %371 = vrot.lane.b32.xlu0 %v369, 112
    %v372 = vpop.permute.xlu0 %371
    %v373 = vrot.slane %v372, 2
    %v374 = vsel %vm309, %v372, %v373
    %v376 = vadd.f32 %v367, %v374
    %v377 = vstv %s264
    %v378 = vmul.f32 %v377, %v364
    %380 = vrot.lane.b32.xlu0 %v378, 96
    %v381 = vpop.permute.xlu0 %380
    %v382 = vrot.slane %v381, 2
    %v383 = vsel %vm319, %v381, %v382
    %v385 = vadd.f32 %v376, %v383
    %v386 = vstv %s271
    %v387 = vmul.f32 %v386, %v364
    %389 = vrot.lane.b32.xlu0 %v387, 80
    %v390 = vpop.permute.xlu0 %389
    %v391 = vrot.slane %v390, 2
    %v392 = vsel %vm329, %v390, %v391
    %v394 = vadd.f32 %v385, %v392
    %v395 = vld [vmem:[#allocation3 + $0x2] sm:$0x3f]
    %v396 = vstv %s278
    %v397 = vmul.f32 %v396, %v395
    %399 = vrot.lane.b32.xlu0 %v397, 64
    %v400 = vpop.permute.xlu0 %399
    %v401 = vrot.slane %v400, 6
    %v402 = vsel %vm340, %v401, %v400
    %v404 = vadd.f32 %v394, %v402
    %v405 = vstv %s285
    %v406 = vmul.f32 %v405, %v395
    %408 = vrot.lane.b32.xlu0 %v406, 48
    %v409 = vpop.permute.xlu0 %408
    %v410 = vrot.slane %v409, 6
    %v411 = vsel %vm350, %v410, %v409
    %v413 = vadd.f32 %v404, %v411
    %v414 = vstv %s292
    %v415 = vmul.f32 %v414, %v395
    %417 = vrot.lane.b32.xlu0 %v415, 32
    %v418 = vpop.permute.xlu0 %417
    %v419 = vrot.slane %v418, 6
    %v420 = vsel %vm360, %v419, %v418
    %v422 = vadd.f32 %v413, %v420
    %v423 = vld [vmem:[#allocation9] ss:$8 sm:$0x3]
    %v425 = vlaneseq
    %v426 = vshrl.u32 %v425, 7
    %v427 = vsub.s32 0, %v426
    %v428 = vrot.slane %v423, %v427
    %v429 = vlaneseq
    %v430 = vshrl.u32 %v429, 7
    %v431 = vsub.s32 1, %v430
    %v432 = vrot.slane %v423, %v431
    %v433 = vcombine.low %v428, %v432
    %v435 = vunpack.c.l.s4 1983009808
    %v436 = vunpack.c.0.s8 %v435
    %v437 = vlaneseq
    %v438 = vshrl.u32 %v437, 7
    %v439 = vsub.s32 %v436, %v438
    %v440 = vrot.slane %v433, %v439
    %441 = vrot.lane.b32.xlu0 %v440, 77
    %v442 = vpop.permute.xlu0 %441
    %v443 = vrot.slane %v442, 6
    %vm444 = vcmask 629760
    %v445 = vsel %vm444, %v443, %v442
    %v447 = vmul.f32 %v422, %v445
    %v448 = vadd.f32 %v447, 0.0
    %v449 = vstv %s202
    %v450 = vmul.f32 %v449, %v299
    %v451 = vadd.f32 %v450, 0.0
    %v452 = vstv %s209
    %v453 = vmul.f32 %v452, %v299
    %455 = vrot.lane.b32.xlu0 %v453, 112
    %v456 = vpop.permute.xlu0 %455
    %v457 = vrot.slane %v456, 2
    %v458 = vsel %vm309, %v456, %v457
    %v460 = vadd.f32 %v451, %v458
    %v461 = vstv %s216
    %v462 = vmul.f32 %v461, %v299
    %464 = vrot.lane.b32.xlu0 %v462, 96
    %v465 = vpop.permute.xlu0 %464
    %v466 = vrot.slane %v465, 2
    %v467 = vsel %vm319, %v465, %v466
    %v469 = vadd.f32 %v460, %v467
    %v470 = vstv %s223
    %v471 = vmul.f32 %v470, %v299
    %473 = vrot.lane.b32.xlu0 %v471, 80
    %v474 = vpop.permute.xlu0 %473
    %v475 = vrot.slane %v474, 2
    %v476 = vsel %vm329, %v474, %v475
    %v478 = vadd.f32 %v469, %v476
    %v479 = vstv %s230
    %v480 = vmul.f32 %v479, %v333
    %482 = vrot.lane.b32.xlu0 %v480, 64
    %v483 = vpop.permute.xlu0 %482
    %v484 = vrot.slane %v483, 6
    %v485 = vsel %vm340, %v484, %v483
    %v487 = vadd.f32 %v478, %v485
    %v488 = vstv %s237
    %v489 = vmul.f32 %v488, %v333
    %491 = vrot.lane.b32.xlu0 %v489, 48
    %v492 = vpop.permute.xlu0 %491
    %v493 = vrot.slane %v492, 6
    %v494 = vsel %vm350, %v493, %v492
    %v496 = vadd.f32 %v487, %v494
    %v497 = vstv %s244
    %v498 = vmul.f32 %v497, %v333
    %500 = vrot.lane.b32.xlu0 %v498, 32
    %v501 = vpop.permute.xlu0 %500
    %v502 = vrot.slane %v501, 6
    %v503 = vsel %vm360, %v502, %v501
    %v505 = vadd.f32 %v496, %v503
    %v506 = vstv %s251
    %v507 = vmul.f32 %v506, %v364
    %v508 = vadd.f32 %v505, %v507
    %v509 = vstv %s258
    %v510 = vmul.f32 %v509, %v364
    %512 = vrot.lane.b32.xlu0 %v510, 112
    %v513 = vpop.permute.xlu0 %512
    %v514 = vrot.slane %v513, 2
    %v515 = vsel %vm309, %v513, %v514
    %v517 = vadd.f32 %v508, %v515
    %v518 = vstv %s265
    %v519 = vmul.f32 %v518, %v364
    %521 = vrot.lane.b32.xlu0 %v519, 96
    %v522 = vpop.permute.xlu0 %521
    %v523 = vrot.slane %v522, 2
    %v524 = vsel %vm319, %v522, %v523
    %v526 = vadd.f32 %v517, %v524
    %v527 = vstv %s272
    %v528 = vmul.f32 %v527, %v364
    %530 = vrot.lane.b32.xlu0 %v528, 80
    %v531 = vpop.permute.xlu0 %530
    %v532 = vrot.slane %v531, 2
    %v533 = vsel %vm329, %v531, %v532
    %v535 = vadd.f32 %v526, %v533
    %v536 = vstv %s279
    %v537 = vmul.f32 %v536, %v395
    %539 = vrot.lane.b32.xlu0 %v537, 64
    %v540 = vpop.permute.xlu0 %539
    %v541 = vrot.slane %v540, 6
    %v542 = vsel %vm340, %v541, %v540
    %v544 = vadd.f32 %v535, %v542
    %v545 = vstv %s286
    %v546 = vmul.f32 %v545, %v395
    %548 = vrot.lane.b32.xlu0 %v546, 48
    %v549 = vpop.permute.xlu0 %548
    %v550 = vrot.slane %v549, 6
    %v551 = vsel %vm350, %v550, %v549
    %v553 = vadd.f32 %v544, %v551
    %v554 = vstv %s293
    %v555 = vmul.f32 %v554, %v395
    %557 = vrot.lane.b32.xlu0 %v555, 32
    %v558 = vpop.permute.xlu0 %557
    %v559 = vrot.slane %v558, 6
    %v560 = vsel %vm360, %v559, %v558
    %v562 = vadd.f32 %v553, %v560
    %s563 = scalar_lea.vmem [#allocation9], 1
    %v564 = vld [vmem:[%s563] ss:$8 sm:$0x3]
    %v566 = vlaneseq
    %v567 = vshrl.u32 %v566, 7
    %v568 = vsub.s32 0, %v567
    %v569 = vrot.slane %v564, %v568
    %v570 = vlaneseq
    %v571 = vshrl.u32 %v570, 7
    %v572 = vsub.s32 1, %v571
    %v573 = vrot.slane %v564, %v572
    %v574 = vcombine.low %v569, %v573
    %v576 = vunpack.c.l.s4 1983009808
    %v577 = vunpack.c.0.s8 %v576
    %v578 = vlaneseq
    %v579 = vshrl.u32 %v578, 7
    %v580 = vsub.s32 %v577, %v579
    %v581 = vrot.slane %v574, %v580
    %582 = vrot.lane.b32.xlu0 %v581, 78
    %v583 = vpop.permute.xlu0 %582
    %v584 = vrot.slane %v583, 6
    %vm585 = vcmask 637952
    %v586 = vsel %vm585, %v584, %v583
    %v588 = vmul.f32 %v562, %v586
    %590 = vrot.lane.b32.xlu0 %v588, 127
    %v591 = vpop.permute.xlu0 %590
    %v592 = vrot.slane %v591, 2
    %vm593 = vcmask 1039360
    %v594 = vsel %vm593, %v591, %v592
    %v596 = vadd.f32 %v448, %v594
    %v597 = vstv %s203
    %v598 = vmul.f32 %v597, %v299
    %v599 = vadd.f32 %v598, 0.0
    %v600 = vstv %s210
    %v601 = vmul.f32 %v600, %v299
    %603 = vrot.lane.b32.xlu0 %v601, 112
    %v604 = vpop.permute.xlu0 %603
    %v605 = vrot.slane %v604, 2
    %v606 = vsel %vm309, %v604, %v605
    %v608 = vadd.f32 %v599, %v606
    %v609 = vstv %s217
    %v610 = vmul.f32 %v609, %v299
    %612 = vrot.lane.b32.xlu0 %v610, 96
    %v613 = vpop.permute.xlu0 %612
    %v614 = vrot.slane %v613, 2
    %v615 = vsel %vm319, %v613, %v614
    %v617 = vadd.f32 %v608, %v615
    %v618 = vstv %s224
    %v619 = vmul.f32 %v618, %v299
    %621 = vrot.lane.b32.xlu0 %v619, 80
    %v622 = vpop.permute.xlu0 %621
    %v623 = vrot.slane %v622, 2
    %v624 = vsel %vm329, %v622, %v623
    %v626 = vadd.f32 %v617, %v624
    %v627 = vstv %s231
    %v628 = vmul.f32 %v627, %v333
    %630 = vrot.lane.b32.xlu0 %v628, 64
    %v631 = vpop.permute.xlu0 %630
    %v632 = vrot.slane %v631, 6
    %v633 = vsel %vm340, %v632, %v631
    %v635 = vadd.f32 %v626, %v633
    %v636 = vstv %s238
    %v637 = vmul.f32 %v636, %v333
    %639 = vrot.lane.b32.xlu0 %v637, 48
    %v640 = vpop.permute.xlu0 %639
    %v641 = vrot.slane %v640, 6
    %v642 = vsel %vm350, %v641, %v640
    %v644 = vadd.f32 %v635, %v642
    %v645 = vstv %s245
    %v646 = vmul.f32 %v645, %v333
    %648 = vrot.lane.b32.xlu0 %v646, 32
    %v649 = vpop.permute.xlu0 %648
    %v650 = vrot.slane %v649, 6
    %v651 = vsel %vm360, %v650, %v649
    %v653 = vadd.f32 %v644, %v651
    %v654 = vstv %s252
    %v655 = vmul.f32 %v654, %v364
    %v656 = vadd.f32 %v653, %v655
    %v657 = vstv %s259
    %v658 = vmul.f32 %v657, %v364
    %660 = vrot.lane.b32.xlu0 %v658, 112
    %v661 = vpop.permute.xlu0 %660
    %v662 = vrot.slane %v661, 2
    %v663 = vsel %vm309, %v661, %v662
    %v665 = vadd.f32 %v656, %v663
    %v666 = vstv %s266
    %v667 = vmul.f32 %v666, %v364
    %669 = vrot.lane.b32.xlu0 %v667, 96
    %v670 = vpop.permute.xlu0 %669
    %v671 = vrot.slane %v670, 2
    %v672 = vsel %vm319, %v670, %v671
    %v674 = vadd.f32 %v665, %v672
    %v675 = vstv %s273
    %v676 = vmul.f32 %v675, %v364
    %678 = vrot.lane.b32.xlu0 %v676, 80
    %v679 = vpop.permute.xlu0 %678
    %v680 = vrot.slane %v679, 2
    %v681 = vsel %vm329, %v679, %v680
    %v683 = vadd.f32 %v674, %v681
    %v684 = vstv %s280
    %v685 = vmul.f32 %v684, %v395
    %687 = vrot.lane.b32.xlu0 %v685, 64
    %v688 = vpop.permute.xlu0 %687
    %v689 = vrot.slane %v688, 6
    %v690 = vsel %vm340, %v689, %v688
    %v692 = vadd.f32 %v683, %v690
    %v693 = vstv %s287
    %v694 = vmul.f32 %v693, %v395
    %696 = vrot.lane.b32.xlu0 %v694, 48
    %v697 = vpop.permute.xlu0 %696
    %v698 = vrot.slane %v697, 6
    %v699 = vsel %vm350, %v698, %v697
    %v701 = vadd.f32 %v692, %v699
    %v702 = vstv %s294
    %v703 = vmul.f32 %v702, %v395
    %705 = vrot.lane.b32.xlu0 %v703, 32
    %v706 = vpop.permute.xlu0 %705
    %v707 = vrot.slane %v706, 6
    %v708 = vsel %vm360, %v707, %v706
    %v710 = vadd.f32 %v701, %v708
    %s711 = scalar_lea.vmem [#allocation9], 2
    %v712 = vld [vmem:[%s711] ss:$8 sm:$0x3]
    %v714 = vlaneseq
    %v715 = vshrl.u32 %v714, 7
    %v716 = vsub.s32 0, %v715
    %v717 = vrot.slane %v712, %v716
    %v718 = vlaneseq
    %v719 = vshrl.u32 %v718, 7
    %v720 = vsub.s32 1, %v719
    %v721 = vrot.slane %v712, %v720
    %v722 = vcombine.low %v717, %v721
    %v724 = vunpack.c.l.s4 1983009808
    %v725 = vunpack.c.0.s8 %v724
    %v726 = vlaneseq
    %v727 = vshrl.u32 %v726, 7
    %v728 = vsub.s32 %v725, %v727
    %v729 = vrot.slane %v722, %v728
    %730 = vrot.lane.b32.xlu0 %v729, 79
    %v731 = vpop.permute.xlu0 %730
    %v732 = vrot.slane %v731, 6
    %vm733 = vcmask 646144
    %v734 = vsel %vm733, %v732, %v731
    %v736 = vmul.f32 %v710, %v734
    %738 = vrot.lane.b32.xlu0 %v736, 126
    %v739 = vpop.permute.xlu0 %738
    %v740 = vrot.slane %v739, 2
    %vm741 = vcmask 1031168
    %v742 = vsel %vm741, %v739, %v740
    %v744 = vadd.f32 %v596, %v742
    %v745 = vstv %s204
    %v746 = vmul.f32 %v745, %v299
    %v747 = vadd.f32 %v746, 0.0
    %v748 = vstv %s211
    %v749 = vmul.f32 %v748, %v299
    %751 = vrot.lane.b32.xlu0 %v749, 112
    %v752 = vpop.permute.xlu0 %751
    %v753 = vrot.slane %v752, 2
    %v754 = vsel %vm309, %v752, %v753
    %v756 = vadd.f32 %v747, %v754
    %v757 = vstv %s218
    %v758 = vmul.f32 %v757, %v299
    %760 = vrot.lane.b32.xlu0 %v758, 96
    %v761 = vpop.permute.xlu0 %760
    %v762 = vrot.slane %v761, 2
    %v763 = vsel %vm319, %v761, %v762
    %v765 = vadd.f32 %v756, %v763
    %v766 = vld [vmem:[#allocation2 + $0x2] sm:$0xf]
    %v767 = vstv %s225
    %v768 = vmul.f32 %v767, %v766
    %770 = vrot.lane.b32.xlu0 %v768, 80
    %v771 = vpop.permute.xlu0 %770
    %v772 = vrot.slane %v771, 6
    %v773 = vsel %vm329, %v772, %v771
    %v775 = vadd.f32 %v765, %v773
    %v776 = vstv %s232
    %v777 = vmul.f32 %v776, %v333
    %779 = vrot.lane.b32.xlu0 %v777, 64
    %v780 = vpop.permute.xlu0 %779
    %v781 = vrot.slane %v780, 6
    %v782 = vsel %vm340, %v781, %v780
    %v784 = vadd.f32 %v775, %v782
    %v785 = vstv %s239
    %v786 = vmul.f32 %v785, %v333
    %788 = vrot.lane.b32.xlu0 %v786, 48
    %v789 = vpop.permute.xlu0 %788
    %v790 = vrot.slane %v789, 6
    %v791 = vsel %vm350, %v790, %v789
    %v793 = vadd.f32 %v784, %v791
    %v794 = vstv %s246
    %v795 = vmul.f32 %v794, %v333
    %797 = vrot.lane.b32.xlu0 %v795, 32
    %v798 = vpop.permute.xlu0 %797
    %v799 = vrot.slane %v798, 6
    %v800 = vsel %vm360, %v799, %v798
    %v802 = vadd.f32 %v793, %v800
    %v803 = vstv %s253
    %v804 = vmul.f32 %v803, %v364
    %v805 = vadd.f32 %v802, %v804
    %v806 = vstv %s260
    %v807 = vmul.f32 %v806, %v364
    %809 = vrot.lane.b32.xlu0 %v807, 112
    %v810 = vpop.permute.xlu0 %809
    %v811 = vrot.slane %v810, 2
    %v812 = vsel %vm309, %v810, %v811
    %v814 = vadd.f32 %v805, %v812
    %v815 = vstv %s267
    %v816 = vmul.f32 %v815, %v364
    %818 = vrot.lane.b32.xlu0 %v816, 96
    %v819 = vpop.permute.xlu0 %818
    %v820 = vrot.slane %v819, 2
    %v821 = vsel %vm319, %v819, %v820
    %v823 = vadd.f32 %v814, %v821
    %v824 = vld [vmem:[#allocation3 + $0x2] sm:$0xf]
    %v825 = vstv %s274
    %v826 = vmul.f32 %v825, %v824
    %828 = vrot.lane.b32.xlu0 %v826, 80
    %v829 = vpop.permute.xlu0 %828
    %v830 = vrot.slane %v829, 6
    %v831 = vsel %vm329, %v830, %v829
    %v833 = vadd.f32 %v823, %v831
    %v834 = vstv %s281
    %v835 = vmul.f32 %v834, %v395
    %837 = vrot.lane.b32.xlu0 %v835, 64
    %v838 = vpop.permute.xlu0 %837
    %v839 = vrot.slane %v838, 6
    %v840 = vsel %vm340, %v839, %v838
    %v842 = vadd.f32 %v833, %v840
    %v843 = vstv %s288
    %v844 = vmul.f32 %v843, %v395
    %846 = vrot.lane.b32.xlu0 %v844, 48
    %v847 = vpop.permute.xlu0 %846
    %v848 = vrot.slane %v847, 6
    %v849 = vsel %vm350, %v848, %v847
    %v851 = vadd.f32 %v842, %v849
    %v852 = vstv %s295
    %v853 = vmul.f32 %v852, %v395
    %855 = vrot.lane.b32.xlu0 %v853, 32
    %v856 = vpop.permute.xlu0 %855
    %v857 = vrot.slane %v856, 6
    %v858 = vsel %vm360, %v857, %v856
    %v860 = vadd.f32 %v851, %v858
    %s861 = scalar_lea.vmem [#allocation9], 3
    %v862 = vld [vmem:[%s861] ss:$8 sm:$0x3]
    %v864 = vlaneseq
    %v865 = vshrl.u32 %v864, 7
    %v866 = vsub.s32 0, %v865
    %v867 = vrot.slane %v862, %v866
    %v868 = vlaneseq
    %v869 = vshrl.u32 %v868, 7
    %v870 = vsub.s32 1, %v869
    %v871 = vrot.slane %v862, %v870
    %v872 = vcombine.low %v867, %v871
    %v874 = vunpack.c.l.s4 1983009808
    %v875 = vunpack.c.0.s8 %v874
    %v876 = vlaneseq
    %v877 = vshrl.u32 %v876, 7
    %v878 = vsub.s32 %v875, %v877
    %v879 = vrot.slane %v872, %v878
    %880 = vrot.lane.b32.xlu0 %v879, 80
    %v881 = vpop.permute.xlu0 %880
    %v882 = vrot.slane %v881, 6
    %v883 = vsel %vm329, %v882, %v881
    %v885 = vmul.f32 %v860, %v883
    %887 = vrot.lane.b32.xlu0 %v885, 125
    %v888 = vpop.permute.xlu0 %887
    %v889 = vrot.slane %v888, 2
    %vm890 = vcmask 1022976
    %v891 = vsel %vm890, %v888, %v889
    %v893 = vadd.f32 %v744, %v891
    %v894 = vstv %s205
    %v895 = vmul.f32 %v894, %v299
    %v896 = vadd.f32 %v895, 0.0
    %v897 = vstv %s212
    %v898 = vmul.f32 %v897, %v299
    %900 = vrot.lane.b32.xlu0 %v898, 112
    %v901 = vpop.permute.xlu0 %900
    %v902 = vrot.slane %v901, 2
    %v903 = vsel %vm309, %v901, %v902
    %v905 = vadd.f32 %v896, %v903
    %v906 = vstv %s219
    %v907 = vmul.f32 %v906, %v299
    %909 = vrot.lane.b32.xlu0 %v907, 96
    %v910 = vpop.permute.xlu0 %909
    %v911 = vrot.slane %v910, 2
    %v912 = vsel %vm319, %v910, %v911
    %v914 = vadd.f32 %v905, %v912
    %v915 = vstv %s226
    %v916 = vmul.f32 %v915, %v333
    %918 = vrot.lane.b32.xlu0 %v916, 80
    %v919 = vpop.permute.xlu0 %918
    %v920 = vrot.slane %v919, 6
    %v921 = vsel %vm329, %v920, %v919
    %v923 = vadd.f32 %v914, %v921
    %v924 = vstv %s233
    %v925 = vmul.f32 %v924, %v333
    %927 = vrot.lane.b32.xlu0 %v925, 64
    %v928 = vpop.permute.xlu0 %927
    %v929 = vrot.slane %v928, 6
    %v930 = vsel %vm340, %v929, %v928
    %v932 = vadd.f32 %v923, %v930
    %v933 = vstv %s240
    %v934 = vmul.f32 %v933, %v333
    %936 = vrot.lane.b32.xlu0 %v934, 48
    %v937 = vpop.permute.xlu0 %936
    %v938 = vrot.slane %v937, 6
    %v939 = vsel %vm350, %v938, %v937
    %v941 = vadd.f32 %v932, %v939
    %v942 = vstv %s247
    %v943 = vmul.f32 %v942, %v333
    %945 = vrot.lane.b32.xlu0 %v943, 32
    %v946 = vpop.permute.xlu0 %945
    %v947 = vrot.slane %v946, 6
    %v948 = vsel %vm360, %v947, %v946
    %v950 = vadd.f32 %v941, %v948
    %v951 = vstv %s254
    %v952 = vmul.f32 %v951, %v364
    %v953 = vadd.f32 %v950, %v952
    %v954 = vstv %s261
    %v955 = vmul.f32 %v954, %v364
    %957 = vrot.lane.b32.xlu0 %v955, 112
    %v958 = vpop.permute.xlu0 %957
    %v959 = vrot.slane %v958, 2
    %v960 = vsel %vm309, %v958, %v959
    %v962 = vadd.f32 %v953, %v960
    %v963 = vstv %s268
    %v964 = vmul.f32 %v963, %v364
    %966 = vrot.lane.b32.xlu0 %v964, 96
    %v967 = vpop.permute.xlu0 %966
    %v968 = vrot.slane %v967, 2
    %v969 = vsel %vm319, %v967, %v968
    %v971 = vadd.f32 %v962, %v969
    %v972 = vstv %s275
    %v973 = vmul.f32 %v972, %v395
    %975 = vrot.lane.b32.xlu0 %v973, 80
    %v976 = vpop.permute.xlu0 %975
    %v977 = vrot.slane %v976, 6
    %v978 = vsel %vm329, %v977, %v976
    %v980 = vadd.f32 %v971, %v978
    %v981 = vstv %s282
    %v982 = vmul.f32 %v981, %v395
    %984 = vrot.lane.b32.xlu0 %v982, 64
    %v985 = vpop.permute.xlu0 %984
    %v986 = vrot.slane %v985, 6
    %v987 = vsel %vm340, %v986, %v985
    %v989 = vadd.f32 %v980, %v987
    %v990 = vstv %s289
    %v991 = vmul.f32 %v990, %v395
    %993 = vrot.lane.b32.xlu0 %v991, 48
    %v994 = vpop.permute.xlu0 %993
    %v995 = vrot.slane %v994, 6
    %v996 = vsel %vm350, %v995, %v994
    %v998 = vadd.f32 %v989, %v996
    %v999 = vstv %s296
    %v1000 = vmul.f32 %v999, %v395
    %1002 = vrot.lane.b32.xlu0 %v1000, 32
    %v1003 = vpop.permute.xlu0 %1002
    %v1004 = vrot.slane %v1003, 6
    %v1005 = vsel %vm360, %v1004, %v1003
    %v1007 = vadd.f32 %v998, %v1005
    %s1008 = scalar_lea.vmem [#allocation9], 4
    %v1009 = vld [vmem:[%s1008] ss:$8 sm:$0x3]
    %v1011 = vlaneseq
    %v1012 = vshrl.u32 %v1011, 7
    %v1013 = vsub.s32 0, %v1012
    %v1014 = vrot.slane %v1009, %v1013
    %v1015 = vlaneseq
    %v1016 = vshrl.u32 %v1015, 7
    %v1017 = vsub.s32 1, %v1016
    %v1018 = vrot.slane %v1009, %v1017
    %v1019 = vcombine.low %v1014, %v1018
    %v1021 = vunpack.c.l.s4 1983009808
    %v1022 = vunpack.c.0.s8 %v1021
    %v1023 = vlaneseq
    %v1024 = vshrl.u32 %v1023, 7
    %v1025 = vsub.s32 %v1022, %v1024
    %v1026 = vrot.slane %v1019, %v1025
    %1027 = vrot.lane.b32.xlu0 %v1026, 81
    %v1028 = vpop.permute.xlu0 %1027
    %v1029 = vrot.slane %v1028, 6
    %vm1030 = vcmask 662528
    %v1031 = vsel %vm1030, %v1029, %v1028
    %v1033 = vmul.f32 %v1007, %v1031
    %1035 = vrot.lane.b32.xlu0 %v1033, 124
    %v1036 = vpop.permute.xlu0 %1035
    %v1037 = vrot.slane %v1036, 2
    %vm1038 = vcmask 1014784
    %v1039 = vsel %vm1038, %v1036, %v1037
    %v1041 = vadd.f32 %v893, %v1039
    %v1042 = vstv %s206
    %v1043 = vmul.f32 %v1042, %v299
    %v1044 = vadd.f32 %v1043, 0.0
    %v1045 = vstv %s213
    %v1046 = vmul.f32 %v1045, %v299
    %1048 = vrot.lane.b32.xlu0 %v1046, 112
    %v1049 = vpop.permute.xlu0 %1048
    %v1050 = vrot.slane %v1049, 2
    %v1051 = vsel %vm309, %v1049, %v1050
    %v1053 = vadd.f32 %v1044, %v1051
    %v1054 = vstv %s220
    %v1055 = vmul.f32 %v1054, %v299
    %1057 = vrot.lane.b32.xlu0 %v1055, 96
    %v1058 = vpop.permute.xlu0 %1057
    %v1059 = vrot.slane %v1058, 2
    %v1060 = vsel %vm319, %v1058, %v1059
    %v1062 = vadd.f32 %v1053, %v1060
    %v1063 = vstv %s227
    %v1064 = vmul.f32 %v1063, %v333
    %1066 = vrot.lane.b32.xlu0 %v1064, 80
    %v1067 = vpop.permute.xlu0 %1066
    %v1068 = vrot.slane %v1067, 6
    %v1069 = vsel %vm329, %v1068, %v1067
    %v1071 = vadd.f32 %v1062, %v1069
    %v1072 = vstv %s234
    %v1073 = vmul.f32 %v1072, %v333
    %1075 = vrot.lane.b32.xlu0 %v1073, 64
    %v1076 = vpop.permute.xlu0 %1075
    %v1077 = vrot.slane %v1076, 6
    %v1078 = vsel %vm340, %v1077, %v1076
    %v1080 = vadd.f32 %v1071, %v1078
    %v1081 = vstv %s241
    %v1082 = vmul.f32 %v1081, %v333
    %1084 = vrot.lane.b32.xlu0 %v1082, 48
    %v1085 = vpop.permute.xlu0 %1084
    %v1086 = vrot.slane %v1085, 6
    %v1087 = vsel %vm350, %v1086, %v1085
    %v1089 = vadd.f32 %v1080, %v1087
    %v1090 = vstv %s248
    %v1091 = vmul.f32 %v1090, %v333
    %1093 = vrot.lane.b32.xlu0 %v1091, 32
    %v1094 = vpop.permute.xlu0 %1093
    %v1095 = vrot.slane %v1094, 6
    %v1096 = vsel %vm360, %v1095, %v1094
    %v1098 = vadd.f32 %v1089, %v1096
    %v1099 = vstv %s255
    %v1100 = vmul.f32 %v1099, %v364
    %v1101 = vadd.f32 %v1098, %v1100
    %v1102 = vstv %s262
    %v1103 = vmul.f32 %v1102, %v364
    %1105 = vrot.lane.b32.xlu0 %v1103, 112
    %v1106 = vpop.permute.xlu0 %1105
    %v1107 = vrot.slane %v1106, 2
    %v1108 = vsel %vm309, %v1106, %v1107
    %v1110 = vadd.f32 %v1101, %v1108
    %v1111 = vstv %s269
    %v1112 = vmul.f32 %v1111, %v364
    %1114 = vrot.lane.b32.xlu0 %v1112, 96
    %v1115 = vpop.permute.xlu0 %1114
    %v1116 = vrot.slane %v1115, 2
    %v1117 = vsel %vm319, %v1115, %v1116
    %v1119 = vadd.f32 %v1110, %v1117
    %v1120 = vstv %s276
    %v1121 = vmul.f32 %v1120, %v395
    %1123 = vrot.lane.b32.xlu0 %v1121, 80
    %v1124 = vpop.permute.xlu0 %1123
    %v1125 = vrot.slane %v1124, 6
    %v1126 = vsel %vm329, %v1125, %v1124
    %v1128 = vadd.f32 %v1119, %v1126
    %v1129 = vstv %s283
    %v1130 = vmul.f32 %v1129, %v395
    %1132 = vrot.lane.b32.xlu0 %v1130, 64
    %v1133 = vpop.permute.xlu0 %1132
    %v1134 = vrot.slane %v1133, 6
    %v1135 = vsel %vm340, %v1134, %v1133
    %v1137 = vadd.f32 %v1128, %v1135
    %v1138 = vstv %s290
    %v1139 = vmul.f32 %v1138, %v395
    %1141 = vrot.lane.b32.xlu0 %v1139, 48
    %v1142 = vpop.permute.xlu0 %1141
    %v1143 = vrot.slane %v1142, 6
    %v1144 = vsel %vm350, %v1143, %v1142
    %v1146 = vadd.f32 %v1137, %v1144
    %v1147 = vstv %s297
    %v1148 = vmul.f32 %v1147, %v395
    %1150 = vrot.lane.b32.xlu0 %v1148, 32
    %v1151 = vpop.permute.xlu0 %1150
    %v1152 = vrot.slane %v1151, 6
    %v1153 = vsel %vm360, %v1152, %v1151
    %v1155 = vadd.f32 %v1146, %v1153
    %s1156 = scalar_lea.vmem [#allocation9], 5
    %v1157 = vld [vmem:[%s1156] ss:$8 sm:$0x3]
    %v1159 = vlaneseq
    %v1160 = vshrl.u32 %v1159, 7
    %v1161 = vsub.s32 0, %v1160
    %v1162 = vrot.slane %v1157, %v1161
    %v1163 = vlaneseq
    %v1164 = vshrl.u32 %v1163, 7
    %v1165 = vsub.s32 1, %v1164
    %v1166 = vrot.slane %v1157, %v1165
    %v1167 = vcombine.low %v1162, %v1166
    %v1169 = vunpack.c.l.s4 1983009808
    %v1170 = vunpack.c.0.s8 %v1169
    %v1171 = vlaneseq
    %v1172 = vshrl.u32 %v1171, 7
    %v1173 = vsub.s32 %v1170, %v1172
    %v1174 = vrot.slane %v1167, %v1173
    %1175 = vrot.lane.b32.xlu0 %v1174, 82
    %v1176 = vpop.permute.xlu0 %1175
    %v1177 = vrot.slane %v1176, 6
    %vm1178 = vcmask 670720
    %v1179 = vsel %vm1178, %v1177, %v1176
    %v1181 = vmul.f32 %v1155, %v1179
    %1183 = vrot.lane.b32.xlu0 %v1181, 123
    %v1184 = vpop.permute.xlu0 %1183
    %v1185 = vrot.slane %v1184, 2
    %vm1186 = vcmask 1006592
    %v1187 = vsel %vm1186, %v1184, %v1185
    %v1189 = vadd.f32 %v1041, %v1187
    %v1190 = vstv %s207
    %v1191 = vmul.f32 %v1190, %v299
    %v1192 = vadd.f32 %v1191, 0.0
    %v1193 = vstv %s214
    %v1194 = vmul.f32 %v1193, %v299
    %1196 = vrot.lane.b32.xlu0 %v1194, 112
    %v1197 = vpop.permute.xlu0 %1196
    %v1198 = vrot.slane %v1197, 2
    %v1199 = vsel %vm309, %v1197, %v1198
    %v1201 = vadd.f32 %v1192, %v1199
    %v1202 = vstv %s221
    %v1203 = vmul.f32 %v1202, %v299
    %1205 = vrot.lane.b32.xlu0 %v1203, 96
    %v1206 = vpop.permute.xlu0 %1205
    %v1207 = vrot.slane %v1206, 2
    %v1208 = vsel %vm319, %v1206, %v1207
    %v1210 = vadd.f32 %v1201, %v1208
    %v1211 = vstv %s228
    %v1212 = vmul.f32 %v1211, %v333
    %1214 = vrot.lane.b32.xlu0 %v1212, 80
    %v1215 = vpop.permute.xlu0 %1214
    %v1216 = vrot.slane %v1215, 6
    %v1217 = vsel %vm329, %v1216, %v1215
    %v1219 = vadd.f32 %v1210, %v1217
    %v1220 = vstv %s235
    %v1221 = vmul.f32 %v1220, %v333
    %1223 = vrot.lane.b32.xlu0 %v1221, 64
    %v1224 = vpop.permute.xlu0 %1223
    %v1225 = vrot.slane %v1224, 6
    %v1226 = vsel %vm340, %v1225, %v1224
    %v1228 = vadd.f32 %v1219, %v1226
    %v1229 = vstv %s242
    %v1230 = vmul.f32 %v1229, %v333
    %1232 = vrot.lane.b32.xlu0 %v1230, 48
    %v1233 = vpop.permute.xlu0 %1232
    %v1234 = vrot.slane %v1233, 6
    %v1235 = vsel %vm350, %v1234, %v1233
    %v1237 = vadd.f32 %v1228, %v1235
    %v1238 = vstv %s249
    %v1239 = vmul.f32 %v1238, %v333
    %1241 = vrot.lane.b32.xlu0 %v1239, 32
    %v1242 = vpop.permute.xlu0 %1241
    %v1243 = vrot.slane %v1242, 6
    %v1244 = vsel %vm360, %v1243, %v1242
    %v1246 = vadd.f32 %v1237, %v1244
    %v1247 = vstv %s256
    %v1248 = vmul.f32 %v1247, %v364
    %v1249 = vadd.f32 %v1246, %v1248
    %v1250 = vstv %s263
    %v1251 = vmul.f32 %v1250, %v364
    %1253 = vrot.lane.b32.xlu0 %v1251, 112
    %v1254 = vpop.permute.xlu0 %1253
    %v1255 = vrot.slane %v1254, 2
    %v1256 = vsel %vm309, %v1254, %v1255
    %v1258 = vadd.f32 %v1249, %v1256
    %v1259 = vstv %s270
    %v1260 = vmul.f32 %v1259, %v364
    %1262 = vrot.lane.b32.xlu0 %v1260, 96
    %v1263 = vpop.permute.xlu0 %1262
    %v1264 = vrot.slane %v1263, 2
    %v1265 = vsel %vm319, %v1263, %v1264
    %v1267 = vadd.f32 %v1258, %v1265
    %v1268 = vstv %s277
    %v1269 = vmul.f32 %v1268, %v395
    %1271 = vrot.lane.b32.xlu0 %v1269, 80
    %v1272 = vpop.permute.xlu0 %1271
    %v1273 = vrot.slane %v1272, 6
    %v1274 = vsel %vm329, %v1273, %v1272
    %v1276 = vadd.f32 %v1267, %v1274
    %v1277 = vstv %s284
    %v1278 = vmul.f32 %v1277, %v395
    %1280 = vrot.lane.b32.xlu0 %v1278, 64
    %v1281 = vpop.permute.xlu0 %1280
    %v1282 = vrot.slane %v1281, 6
    %v1283 = vsel %vm340, %v1282, %v1281
    %v1285 = vadd.f32 %v1276, %v1283
    %v1286 = vstv %s291
    %v1287 = vmul.f32 %v1286, %v395
    %1289 = vrot.lane.b32.xlu0 %v1287, 48
    %v1290 = vpop.permute.xlu0 %1289
    %v1291 = vrot.slane %v1290, 6
    %v1292 = vsel %vm350, %v1291, %v1290
    %v1294 = vadd.f32 %v1285, %v1292
    %v1295 = vstv %s298
    %v1296 = vmul.f32 %v1295, %v395
    %1298 = vrot.lane.b32.xlu0 %v1296, 32
    %v1299 = vpop.permute.xlu0 %1298
    %v1300 = vrot.slane %v1299, 6
    %v1301 = vsel %vm360, %v1300, %v1299
    %v1303 = vadd.f32 %v1294, %v1301
    %s1304 = scalar_lea.vmem [#allocation9], 6
    %v1305 = vld [vmem:[%s1304] ss:$8 sm:$0x3]
    %v1307 = vlaneseq
    %v1308 = vshrl.u32 %v1307, 7
    %v1309 = vsub.s32 0, %v1308
    %v1310 = vrot.slane %v1305, %v1309
    %v1311 = vlaneseq
    %v1312 = vshrl.u32 %v1311, 7
    %v1313 = vsub.s32 1, %v1312
    %v1314 = vrot.slane %v1305, %v1313
    %v1315 = vcombine.low %v1310, %v1314
    %v1317 = vunpack.c.l.s4 1983009808
    %v1318 = vunpack.c.0.s8 %v1317
    %v1319 = vlaneseq
    %v1320 = vshrl.u32 %v1319, 7
    %v1321 = vsub.s32 %v1318, %v1320
    %v1322 = vrot.slane %v1315, %v1321
    %1323 = vrot.lane.b32.xlu0 %v1322, 83
    %v1324 = vpop.permute.xlu0 %1323
    %v1325 = vrot.slane %v1324, 6
    %vm1326 = vcmask 678912
    %v1327 = vsel %vm1326, %v1325, %v1324
    %v1329 = vmul.f32 %v1303, %v1327
    %1331 = vrot.lane.b32.xlu0 %v1329, 122
    %v1332 = vpop.permute.xlu0 %1331
    %v1333 = vrot.slane %v1332, 2
    %vm1334 = vcmask 998400
    %v1335 = vsel %vm1334, %v1332, %v1333
    %v1337 = vadd.f32 %v1189, %v1335
    %v1338 = vxor.u32 %v1337, 2147483648
    %v1339 = vmul.f32 %v1338, 1.442695
    %v1340 = vpow.pop %v1339
    %v1341 = vadd.f32 %v1340, 1.0
    %v1342 = vrcp.pop %v1341
    %v1343 = vmul.f32 1.0, %v1342
    %v1345 = vlaneseq
    %v1346 = vshrl.u32 %v1345, 7
    %v1347 = vsub.s32 0, %v1346
    %v1348 = vrot.slane %v1343, %v1347
    %v1349 = vlaneseq
    %v1350 = vshrl.u32 %v1349, 7
    %v1351 = vsub.s32 2, %v1350
    %v1352 = vrot.slane %v1343, %v1351
    %v1353 = vlaneseq
    %v1354 = vshrl.u32 %v1353, 7
    %v1355 = vsub.s32 4, %v1354
    %v1356 = vrot.slane %v1343, %v1355
    %v1360 = vlaneseq
    %v1361 = vshrl.u32 %v1360, 7
    %v1362 = vsub.s32 0, %v1361
    %v1363 = vrot.slane %v1348, %v1362
    %v1364 = vlaneseq
    %v1365 = vshrl.u32 %v1364, 7
    %v1366 = vsub.s32 0, %v1365
    %v1367 = vrot.slane %v1352, %v1366
    %v1368 = vlaneseq
    %v1369 = vshrl.u32 %v1368, 7
    %v1370 = vsub.s32 0, %v1369
    %v1371 = vrot.slane %v1356, %v1370
    %v1372 = vld [vmem:[#allocation6] sm:$0xff]
    %v1376 = vcombine.low %v1363, %v1367
    %1377 = vrot.lane.b32.xlu0 %v1376, 51
    %v1378 = vpop.permute.xlu0 %1377
    %1379 = vrot.lane.b32.xlu0 %v1371, 51
    %v1380 = vpop.permute.xlu0 %1379
    %v1381 = vrot.slane %v1378, 4
    %v1382 = vrot.slane %v1380, 4
    %v1383 = vsel %vm51, %v1381, %v1382
    %vm1384 = vcmask 416768
    %v1385 = vsel %vm1384, %v1378, %v1383
    %v1387 = vmul.f32 %v1372, %v1385
    %1388 = vst [vmem:[#allocation11] sm:$0xff] %v1387
    %v1389 = vlaneseq
    %v1390 = vshrl.u32 %v1389, 7
    %v1391 = vsub.s32 1, %v1390
    %v1392 = vrot.slane %v1343, %v1391
    %v1393 = vlaneseq
    %v1394 = vshrl.u32 %v1393, 7
    %v1395 = vsub.s32 3, %v1394
    %v1396 = vrot.slane %v1343, %v1395
    %v1397 = vlaneseq
    %v1398 = vshrl.u32 %v1397, 7
    %v1399 = vsub.s32 5, %v1398
    %v1400 = vrot.slane %v1343, %v1399
    %v1404 = vlaneseq
    %v1405 = vshrl.u32 %v1404, 7
    %v1406 = vsub.s32 1, %v1405
    %v1407 = vrot.slane %v1392, %v1406
    %v1408 = vlaneseq
    %v1409 = vshrl.u32 %v1408, 7
    %v1410 = vsub.s32 1, %v1409
    %v1411 = vrot.slane %v1396, %v1410
    %v1412 = vlaneseq
    %v1413 = vshrl.u32 %v1412, 7
    %v1414 = vsub.s32 1, %v1413
    %v1415 = vrot.slane %v1400, %v1414
    %v1416 = vld [vmem:[%s126] sm:$0xff]
    %v1420 = vcombine.low %v1407, %v1411
    %1421 = vrot.lane.b32.xlu0 %v1420, 51
    %v1422 = vpop.permute.xlu0 %1421
    %1423 = vrot.lane.b32.xlu0 %v1415, 51
    %v1424 = vpop.permute.xlu0 %1423
    %v1425 = vrot.slane %v1422, 4
    %v1426 = vrot.slane %v1424, 4
    %v1427 = vsel %vm51, %v1425, %v1426
    %v1428 = vsel %vm1384, %v1422, %v1427
    %v1430 = vmul.f32 %v1416, %v1428
    %s1431 = scalar_lea.vmem [#allocation11], 8
    %1432 = vst [vmem:[%s1431] sm:$0xff] %v1430
    // Predicated region
    $region18: #{tpu_custom_call.1} parent=1 // pred_check
      _
    $region19: #{tpu_custom_call.1} parent=1 // pred_check_branch
      %1434 = sbr.rel (0) target = $region21
    $region20: #{tpu_custom_call.1} parent=1 // pred_region
      %s1436 = ssub.s32 256, 256
      %1437 = vsyncadd [#allocation8], %s1436
      %s1438 = sshll.u32 [#allocation11], 4
      %s1439 = int_to_ptr.vmem [resolvable:$true] %s1438
      %1444 = dma.vmem_to_hbm [thread:$0]  %s1439, 256, %s3, [#allocation8], 128, 128, 8
    $region21: #{tpu_custom_call.1} parent=1 // pred_fallthru
      _
    // Predicated region
    $region22: #{tpu_custom_call.1} parent=1 // pred_check
      _
    $region23: #{tpu_custom_call.1} parent=1 // pred_check_branch
      %1446 = sbr.rel (0) target = $region25
    $region24: #{tpu_custom_call.1} parent=1 // pred_region
      %1447 = dma.done [#allocation8], 256
    $region25: #{tpu_custom_call.1} parent=1 // pred_fallthru
      _
    %1448 = vsyncpa [#allocation7], 1
    %1449 = vsyncpa [#allocation10], 1
    %1450 = vsyncpa [#allocation8], 1

</llo_original>
